<compile_context>
chip_gen: v5e
topology: v5e:2x2
jax: 0.10.0
libtpu: 0.0.40
codegen_flags: <defaults>
</compile_context>

<pallas_src>
import jax
import jax.numpy as jnp
from jax.experimental import pallas as pl

P = 128  # padded lane width for every feature dimension (lane-dense everywhere)


# ------------------------------ fused kernel ------------------------------- #

def _gnn15_fused_kernel(x0_ref, ea0_ref, src_col_ref, dst_col_ref, dst_row_ref,
                        w_pe_ref, b_pe_ref,
                        w_msg_x_ref, w_msg_e_ref, b_msg_ref,
                        w_self_ref, b_self_ref,
                        w_edge_s_ref, w_edge_d_ref, w_edge_e_ref, b_edge_ref,
                        x_out_ref):
    f32, bf16 = jnp.float32, jnp.bfloat16
    N = x0_ref.shape[0]
    E = ea0_ref.shape[0]

    # Gather / scatter one-hots built once from the index vectors; they live in
    # vregs/VMEM only (never in HBM).  Exact in bf16 since values are 0/1.
    ids_en = jax.lax.broadcasted_iota(jnp.int32, (E, N), 1)
    g_src = (ids_en == src_col_ref[...]).astype(bf16)      # [E, N] gather src rows
    g_dst = (ids_en == dst_col_ref[...]).astype(bf16)      # [E, N] gather dst rows
    ids_ne = jax.lax.broadcasted_iota(jnp.int32, (N, E), 0)
    s_dst = (ids_ne == dst_row_ref[...]).astype(f32)       # [N, E] scatter-add to dst

    # edge projection (no relu), f32 accumulation
    ea = (jnp.dot(ea0_ref[...].astype(bf16), w_pe_ref[...],
                  preferred_element_type=f32) + b_pe_ref[...])            # [E, P]
    x = x0_ref[...]                                                        # [N, P] f32

    # three message-passing layers; relu on the first two (matches forward)
    for layer, relu in ((0, True), (1, True), (2, False)):
        xb, eab = x.astype(bf16), ea.astype(bf16)
        xs = jnp.dot(g_src, xb, preferred_element_type=f32).astype(bf16)   # [E, P]
        xd = jnp.dot(g_dst, xb, preferred_element_type=f32).astype(bf16)   # [E, P]

        # edge-conditioned messages, scatter-added into destination nodes
        msg = (jnp.dot(xs, w_msg_x_ref[layer], preferred_element_type=f32)
               + jnp.dot(eab, w_msg_e_ref[layer], preferred_element_type=f32)
               + b_msg_ref[layer])                                         # [E, P]
        agg = jnp.dot(s_dst, msg, preferred_element_type=f32)              # [N, P]

        x_new = (jnp.dot(xb, w_self_ref[layer], preferred_element_type=f32)
                 + b_self_ref[layer] + agg)                                # [N, P]
        ea_new = (jnp.dot(xs, w_edge_s_ref[layer], preferred_element_type=f32)
                  + jnp.dot(xd, w_edge_d_ref[layer], preferred_element_type=f32)
                  + jnp.dot(eab, w_edge_e_ref[layer], preferred_element_type=f32)
                  + b_edge_ref[layer])                                     # [E, P]
        if relu:
            x_new = jnp.maximum(x_new, 0.0)
            ea_new = jnp.maximum(ea_new, 0.0)
        x, ea = x_new, ea_new

    # Lane-dense (N, 128) f32 store.
    x_out_ref[...] = x


# ----------------------------- parameter setup ----------------------------- #

def init_linear(key, fan_in, fan_out):
    k1, k2 = jax.random.split(key)
    scale = 1.0 / jnp.sqrt(jnp.float32(fan_in))
    w = jax.random.uniform(k1, (fan_in, fan_out), jnp.float32, -scale, scale)
    b = jax.random.uniform(k2, (fan_out,), jnp.float32, -scale, scale)
    return w, b


def _pad_w(w):
    k, n = w.shape
    return jnp.pad(w, ((0, P - k), (0, P - n)))


def _pad_b(b):
    return jnp.pad(b, (0, P - b.shape[0])).reshape(1, P)


def init_conv(key, node_in, node_out, edge_in):
    k1, k2, k3 = jax.random.split(key, 3)
    # Same math as concatenated-input linears, but stored as per-input blocks
    # so the kernel never materializes jnp.concatenate.
    w_msg, b_msg = init_linear(k1, node_in + edge_in, node_out)
    w_self, b_self = init_linear(k2, node_in, node_out)
    w_edge, b_edge = init_linear(k3, 2 * node_in + edge_in, edge_in)
    return dict(
        w_msg_x=w_msg[:node_in], w_msg_e=w_msg[node_in:], b_msg=b_msg,
        w_self=w_self, b_self=b_self,
        w_edge_s=w_edge[:node_in], w_edge_d=w_edge[node_in:2 * node_in],
        w_edge_e=w_edge[2 * node_in:], b_edge=b_edge)


def pack_params(embedding, w_pe, b_pe, convs, out_dim):
    """Pad all feature dims to 128 lanes, stack the 3 conv layers, bf16 weights."""
    bf16 = jnp.bfloat16
    p = dict(embedding=embedding, out_dim=out_dim,
             w_pe=_pad_w(w_pe).astype(bf16), b_pe=_pad_b(b_pe))
    for name in ("w_msg_x", "w_msg_e", "w_self",
                 "w_edge_s", "w_edge_d", "w_edge_e"):
        p[name] = jnp.stack([_pad_w(c[name]) for c in convs]).astype(bf16)  # [3,P,P]
    for name in ("b_msg", "b_self", "b_edge"):
        p[name] = jnp.stack([_pad_b(c[name]) for c in convs])               # [3,1,P] f32
    return p


# ------------------------------- GNN forward -------------------------------- #

def gnn15_forward(params, tokens, src, dst, edge_attr_raw, batch, n_graphs):
    N = tokens.shape[0]
    E = src.shape[0]

    # tokens -> node embeddings (glue gather; eval => no noise, no node dropout)
    x0 = jnp.take(params["embedding"], tokens, axis=0)
    x0 = jnp.pad(x0, ((0, 0), (0, P - x0.shape[1])))                # [N, P] f32
    ea0 = jnp.pad(edge_attr_raw, ((0, 0), (0, P - edge_attr_raw.shape[1])))  # [E, P]

    src_col = src.reshape(E, 1).astype(jnp.int32)
    dst_col = dst.reshape(E, 1).astype(jnp.int32)
    dst_row = dst.reshape(1, E).astype(jnp.int32)

    # Single whole-array pallas_call (grid=(), everything resident in VMEM:
    # ~0.7 MiB total, far under the scoped VMEM limit on v5e/v6e/v7x).
    x_out = pl.pallas_call(
        _gnn15_fused_kernel,
        out_shape=jax.ShapeDtypeStruct((N, P), jnp.float32),
    )(x0, ea0, src_col, dst_col, dst_row,
      params["w_pe"], params["b_pe"],
      params["w_msg_x"], params["w_msg_e"], params["b_msg"],
      params["w_self"], params["b_self"],
      params["w_edge_s"], params["w_edge_d"], params["w_edge_e"],
      params["b_edge"])

    # global_master_pool: select the master node (last node) of each graph,
    # driven by the `batch` tensor so ragged graphs are handled correctly.
    masters = jnp.searchsorted(batch, jnp.arange(n_graphs, dtype=batch.dtype),
                               side="right") - 1
    return jnp.take(x_out, masters, axis=0)[:, :params["out_dim"]]


# ---------------------------------- main ------------------------------------ #

if __name__ == "__main__":
    key = jax.random.PRNGKey(0)
    ks = jax.random.split(key, 8)

    # small synthetic configuration
    emb_dim = in_dim = 32
    middle_dim = 32
    out_dim = 32
    edge_dim = 8
    edge_proj_dim = 16
    vocab = 20                      # synthetic CLIP vocab (+4 extra tokens)
    n_graphs, n_per_graph = 2, 8
    N = n_graphs * n_per_graph

    # embedding_init='random' path of the module: randn weights
    embedding = jax.random.normal(ks[0], (vocab, emb_dim), jnp.float32) * 0.02
    w_pe, b_pe = init_linear(ks[1], edge_dim, edge_proj_dim)
    convs = [init_conv(ks[2], in_dim, middle_dim, edge_proj_dim),
             init_conv(ks[3], middle_dim, middle_dim, edge_proj_dim),
             init_conv(ks[4], middle_dim, out_dim, edge_proj_dim)]
    params = pack_params(embedding, w_pe, b_pe, convs, out_dim)
    # logit_scale exists in the module but is unused in forward.

    # node tokens
    tokens = jax.random.randint(ks[5], (N,), 0, vocab, dtype=jnp.int32)

    # deterministic edges: ring within each graph + star to the master node
    src_list, dst_list = [], []
    for g in range(n_graphs):
        base = g * n_per_graph
        master = base + n_per_graph - 1
        for i in range(n_per_graph):
            src_list.append(base + i)
            dst_list.append(base + (i + 1) % n_per_graph)
            src_list.append(base + i)
            dst_list.append(master)
    src = jnp.asarray(src_list, jnp.int32)
    dst = jnp.asarray(dst_list, jnp.int32)
    E = src.shape[0]

    edge_attr_raw = jax.random.normal(ks[6], (E, edge_dim), jnp.float32)
    batch = jnp.repeat(jnp.arange(n_graphs, dtype=jnp.int32), n_per_graph)

    out = gnn15_forward(params, tokens, src, dst, edge_attr_raw, batch, n_graphs)
    out = jax.block_until_ready(out)
    assert out.shape == (n_graphs, out_dim)
    assert jnp.all(jnp.isfinite(out))
    print("KERNEL_OK")
</pallas_src>

<mosaic_0001>
module attributes {stable_mosaic.version = 11 : i64} {
  func.func @_gnn15_fused_kernel(%arg0: memref<16x128xf32, #tpu.memory_space<vmem>>, %arg1: memref<32x128xf32, #tpu.memory_space<vmem>>, %arg2: memref<32x1xi32, #tpu.memory_space<vmem>>, %arg3: memref<32x1xi32, #tpu.memory_space<vmem>>, %arg4: memref<1x32xi32, #tpu.memory_space<vmem>>, %arg5: memref<128x128xbf16, #tpu.memory_space<vmem>>, %arg6: memref<1x128xf32, #tpu.memory_space<vmem>>, %arg7: memref<3x128x128xbf16, #tpu.memory_space<vmem>>, %arg8: memref<3x128x128xbf16, #tpu.memory_space<vmem>>, %arg9: memref<3x1x128xf32, #tpu.memory_space<vmem>>, %arg10: memref<3x128x128xbf16, #tpu.memory_space<vmem>>, %arg11: memref<3x1x128xf32, #tpu.memory_space<vmem>>, %arg12: memref<3x128x128xbf16, #tpu.memory_space<vmem>>, %arg13: memref<3x128x128xbf16, #tpu.memory_space<vmem>>, %arg14: memref<3x128x128xbf16, #tpu.memory_space<vmem>>, %arg15: memref<3x1x128xf32, #tpu.memory_space<vmem>>, %arg16: memref<16x128xf32, #tpu.memory_space<vmem>>) attributes {dimension_semantics = [], scalar_prefetch = 0 : i64, scratch_operands = 0 : i64, tpu.core_type = #tpu.core_type<tc>} {
    %0 = tpu.iota {dimensions = array<i32: 1>} : vector<32x16xi32>
    %c0 = arith.constant 0 : index
    %c0_0 = arith.constant 0 : index
    %1 = vector.load %arg2[%c0, %c0_0] : memref<32x1xi32, #tpu.memory_space<vmem>>, vector<32x1xi32>
    %2 = vector.broadcast %1 : vector<32x1xi32> to vector<32x16xi32>
    %3 = arith.cmpi eq, %0, %2 : vector<32x16xi32>
    %4 = arith.extui %3 : vector<32x16xi1> to vector<32x16xi32>
    %5 = arith.sitofp %4 : vector<32x16xi32> to vector<32x16xf32>
    %6 = arith.truncf %5 : vector<32x16xf32> to vector<32x16xbf16>
    %c0_1 = arith.constant 0 : index
    %c0_2 = arith.constant 0 : index
    %7 = vector.load %arg3[%c0_1, %c0_2] : memref<32x1xi32, #tpu.memory_space<vmem>>, vector<32x1xi32>
    %8 = vector.broadcast %7 : vector<32x1xi32> to vector<32x16xi32>
    %9 = arith.cmpi eq, %0, %8 : vector<32x16xi32>
    %10 = arith.extui %9 : vector<32x16xi1> to vector<32x16xi32>
    %11 = arith.sitofp %10 : vector<32x16xi32> to vector<32x16xf32>
    %12 = arith.truncf %11 : vector<32x16xf32> to vector<32x16xbf16>
    %13 = tpu.iota {dimensions = array<i32: 0>} : vector<16x32xi32>
    %c0_3 = arith.constant 0 : index
    %c0_4 = arith.constant 0 : index
    %14 = vector.load %arg4[%c0_3, %c0_4] : memref<1x32xi32, #tpu.memory_space<vmem>>, vector<1x32xi32>
    %15 = vector.broadcast %14 : vector<1x32xi32> to vector<16x32xi32>
    %16 = arith.cmpi eq, %13, %15 : vector<16x32xi32>
    %17 = arith.extui %16 : vector<16x32xi1> to vector<16x32xi32>
    %18 = arith.sitofp %17 : vector<16x32xi32> to vector<16x32xf32>
    %c0_5 = arith.constant 0 : index
    %c0_6 = arith.constant 0 : index
    %19 = vector.load %arg1[%c0_5, %c0_6] : memref<32x128xf32, #tpu.memory_space<vmem>>, vector<32x128xf32>
    %20 = arith.truncf %19 : vector<32x128xf32> to vector<32x128xbf16>
    %c0_7 = arith.constant 0 : index
    %c0_8 = arith.constant 0 : index
    %21 = vector.load %arg5[%c0_7, %c0_8] : memref<128x128xbf16, #tpu.memory_space<vmem>>, vector<128x128xbf16>
    %cst = arith.constant dense<0.000000e+00> : vector<32x128xf32>
    %22 = tpu.matmul %20, %21, %cst {dimension_numbers = #tpu.dot_dimension_numbers<[1], [0], [0], [1], [0, 0, 1, 1], [], []>} : vector<32x128xbf16>, vector<128x128xbf16>, vector<32x128xf32> -> vector<32x128xf32>
    %c0_9 = arith.constant 0 : index
    %c0_10 = arith.constant 0 : index
    %23 = vector.load %arg6[%c0_9, %c0_10] : memref<1x128xf32, #tpu.memory_space<vmem>>, vector<1x128xf32>
    %24 = vector.broadcast %23 : vector<1x128xf32> to vector<32x128xf32>
    %25 = arith.addf %22, %24 : vector<32x128xf32>
    %c0_11 = arith.constant 0 : index
    %c0_12 = arith.constant 0 : index
    %26 = vector.load %arg0[%c0_11, %c0_12] : memref<16x128xf32, #tpu.memory_space<vmem>>, vector<16x128xf32>
    %27 = arith.truncf %26 : vector<16x128xf32> to vector<16x128xbf16>
    %28 = arith.truncf %25 : vector<32x128xf32> to vector<32x128xbf16>
    %cst_13 = arith.constant dense<0.000000e+00> : vector<32x128xf32>
    %29 = tpu.matmul %6, %27, %cst_13 {dimension_numbers = #tpu.dot_dimension_numbers<[1], [0], [0], [1], [0, 0, 1, 1], [], []>} : vector<32x16xbf16>, vector<16x128xbf16>, vector<32x128xf32> -> vector<32x128xf32>
    %30 = arith.truncf %29 : vector<32x128xf32> to vector<32x128xbf16>
    %cst_14 = arith.constant dense<0.000000e+00> : vector<32x128xf32>
    %31 = tpu.matmul %12, %27, %cst_14 {dimension_numbers = #tpu.dot_dimension_numbers<[1], [0], [0], [1], [0, 0, 1, 1], [], []>} : vector<32x16xbf16>, vector<16x128xbf16>, vector<32x128xf32> -> vector<32x128xf32>
    %32 = arith.truncf %31 : vector<32x128xf32> to vector<32x128xbf16>
    %c0_15 = arith.constant 0 : index
    %c0_16 = arith.constant 0 : index
    %c0_17 = arith.constant 0 : index
    %33 = vector.load %arg7[%c0_15, %c0_16, %c0_17] : memref<3x128x128xbf16, #tpu.memory_space<vmem>>, vector<1x128x128xbf16>
    %34 = vector.shape_cast %33 : vector<1x128x128xbf16> to vector<128x128xbf16>
    %cst_18 = arith.constant dense<0.000000e+00> : vector<32x128xf32>
    %35 = tpu.matmul %30, %34, %cst_18 {dimension_numbers = #tpu.dot_dimension_numbers<[1], [0], [0], [1], [0, 0, 1, 1], [], []>} : vector<32x128xbf16>, vector<128x128xbf16>, vector<32x128xf32> -> vector<32x128xf32>
    %c0_19 = arith.constant 0 : index
    %c0_20 = arith.constant 0 : index
    %c0_21 = arith.constant 0 : index
    %36 = vector.load %arg8[%c0_19, %c0_20, %c0_21] : memref<3x128x128xbf16, #tpu.memory_space<vmem>>, vector<1x128x128xbf16>
    %37 = vector.shape_cast %36 : vector<1x128x128xbf16> to vector<128x128xbf16>
    %cst_22 = arith.constant dense<0.000000e+00> : vector<32x128xf32>
    %38 = tpu.matmul %28, %37, %cst_22 {dimension_numbers = #tpu.dot_dimension_numbers<[1], [0], [0], [1], [0, 0, 1, 1], [], []>} : vector<32x128xbf16>, vector<128x128xbf16>, vector<32x128xf32> -> vector<32x128xf32>
    %39 = arith.addf %35, %38 : vector<32x128xf32>
    %c0_23 = arith.constant 0 : index
    %c0_24 = arith.constant 0 : index
    %c0_25 = arith.constant 0 : index
    %40 = vector.load %arg9[%c0_23, %c0_24, %c0_25] : memref<3x1x128xf32, #tpu.memory_space<vmem>>, vector<1x1x128xf32>
    %41 = vector.shape_cast %40 : vector<1x1x128xf32> to vector<1x128xf32>
    %42 = vector.broadcast %41 : vector<1x128xf32> to vector<32x128xf32>
    %43 = arith.addf %39, %42 : vector<32x128xf32>
    %cst_26 = arith.constant dense<0.000000e+00> : vector<16x128xf32>
    %44 = tpu.matmul %18, %43, %cst_26 {dimension_numbers = #tpu.dot_dimension_numbers<[1], [0], [0], [1], [0, 0, 1, 1], [], []>} : vector<16x32xf32>, vector<32x128xf32>, vector<16x128xf32> -> vector<16x128xf32>
    %c0_27 = arith.constant 0 : index
    %c0_28 = arith.constant 0 : index
    %c0_29 = arith.constant 0 : index
    %45 = vector.load %arg10[%c0_27, %c0_28, %c0_29] : memref<3x128x128xbf16, #tpu.memory_space<vmem>>, vector<1x128x128xbf16>
    %46 = vector.shape_cast %45 : vector<1x128x128xbf16> to vector<128x128xbf16>
    %cst_30 = arith.constant dense<0.000000e+00> : vector<16x128xf32>
    %47 = tpu.matmul %27, %46, %cst_30 {dimension_numbers = #tpu.dot_dimension_numbers<[1], [0], [0], [1], [0, 0, 1, 1], [], []>} : vector<16x128xbf16>, vector<128x128xbf16>, vector<16x128xf32> -> vector<16x128xf32>
    %c0_31 = arith.constant 0 : index
    %c0_32 = arith.constant 0 : index
    %c0_33 = arith.constant 0 : index
    %48 = vector.load %arg11[%c0_31, %c0_32, %c0_33] : memref<3x1x128xf32, #tpu.memory_space<vmem>>, vector<1x1x128xf32>
    %49 = vector.shape_cast %48 : vector<1x1x128xf32> to vector<1x128xf32>
    %50 = vector.broadcast %49 : vector<1x128xf32> to vector<16x128xf32>
    %51 = arith.addf %47, %50 : vector<16x128xf32>
    %52 = arith.addf %51, %44 : vector<16x128xf32>
    %c0_34 = arith.constant 0 : index
    %c0_35 = arith.constant 0 : index
    %c0_36 = arith.constant 0 : index
    %53 = vector.load %arg12[%c0_34, %c0_35, %c0_36] : memref<3x128x128xbf16, #tpu.memory_space<vmem>>, vector<1x128x128xbf16>
    %54 = vector.shape_cast %53 : vector<1x128x128xbf16> to vector<128x128xbf16>
    %cst_37 = arith.constant dense<0.000000e+00> : vector<32x128xf32>
    %55 = tpu.matmul %30, %54, %cst_37 {dimension_numbers = #tpu.dot_dimension_numbers<[1], [0], [0], [1], [0, 0, 1, 1], [], []>} : vector<32x128xbf16>, vector<128x128xbf16>, vector<32x128xf32> -> vector<32x128xf32>
    %c0_38 = arith.constant 0 : index
    %c0_39 = arith.constant 0 : index
    %c0_40 = arith.constant 0 : index
    %56 = vector.load %arg13[%c0_38, %c0_39, %c0_40] : memref<3x128x128xbf16, #tpu.memory_space<vmem>>, vector<1x128x128xbf16>
    %57 = vector.shape_cast %56 : vector<1x128x128xbf16> to vector<128x128xbf16>
    %cst_41 = arith.constant dense<0.000000e+00> : vector<32x128xf32>
    %58 = tpu.matmul %32, %57, %cst_41 {dimension_numbers = #tpu.dot_dimension_numbers<[1], [0], [0], [1], [0, 0, 1, 1], [], []>} : vector<32x128xbf16>, vector<128x128xbf16>, vector<32x128xf32> -> vector<32x128xf32>
    %59 = arith.addf %55, %58 : vector<32x128xf32>
    %c0_42 = arith.constant 0 : index
    %c0_43 = arith.constant 0 : index
    %c0_44 = arith.constant 0 : index
    %60 = vector.load %arg14[%c0_42, %c0_43, %c0_44] : memref<3x128x128xbf16, #tpu.memory_space<vmem>>, vector<1x128x128xbf16>
    %61 = vector.shape_cast %60 : vector<1x128x128xbf16> to vector<128x128xbf16>
    %cst_45 = arith.constant dense<0.000000e+00> : vector<32x128xf32>
    %62 = tpu.matmul %28, %61, %cst_45 {dimension_numbers = #tpu.dot_dimension_numbers<[1], [0], [0], [1], [0, 0, 1, 1], [], []>} : vector<32x128xbf16>, vector<128x128xbf16>, vector<32x128xf32> -> vector<32x128xf32>
    %63 = arith.addf %59, %62 : vector<32x128xf32>
    %c0_46 = arith.constant 0 : index
    %c0_47 = arith.constant 0 : index
    %c0_48 = arith.constant 0 : index
    %64 = vector.load %arg15[%c0_46, %c0_47, %c0_48] : memref<3x1x128xf32, #tpu.memory_space<vmem>>, vector<1x1x128xf32>
    %65 = vector.shape_cast %64 : vector<1x1x128xf32> to vector<1x128xf32>
    %66 = vector.broadcast %65 : vector<1x128xf32> to vector<32x128xf32>
    %67 = arith.addf %63, %66 : vector<32x128xf32>
    %cst_49 = arith.constant 0.000000e+00 : f32
    %68 = vector.broadcast %cst_49 : f32 to vector<16x128xf32>
    %69 = arith.maximumf %52, %68 : vector<16x128xf32>
    %cst_50 = arith.constant 0.000000e+00 : f32
    %70 = vector.broadcast %cst_50 : f32 to vector<32x128xf32>
    %71 = arith.maximumf %67, %70 : vector<32x128xf32>
    %72 = arith.truncf %69 : vector<16x128xf32> to vector<16x128xbf16>
    %73 = arith.truncf %71 : vector<32x128xf32> to vector<32x128xbf16>
    %cst_51 = arith.constant dense<0.000000e+00> : vector<32x128xf32>
    %74 = tpu.matmul %6, %72, %cst_51 {dimension_numbers = #tpu.dot_dimension_numbers<[1], [0], [0], [1], [0, 0, 1, 1], [], []>} : vector<32x16xbf16>, vector<16x128xbf16>, vector<32x128xf32> -> vector<32x128xf32>
    %75 = arith.truncf %74 : vector<32x128xf32> to vector<32x128xbf16>
    %cst_52 = arith.constant dense<0.000000e+00> : vector<32x128xf32>
    %76 = tpu.matmul %12, %72, %cst_52 {dimension_numbers = #tpu.dot_dimension_numbers<[1], [0], [0], [1], [0, 0, 1, 1], [], []>} : vector<32x16xbf16>, vector<16x128xbf16>, vector<32x128xf32> -> vector<32x128xf32>
    %77 = arith.truncf %76 : vector<32x128xf32> to vector<32x128xbf16>
    %c1 = arith.constant 1 : index
    %c0_53 = arith.constant 0 : index
    %c0_54 = arith.constant 0 : index
    %78 = vector.load %arg7[%c1, %c0_53, %c0_54] : memref<3x128x128xbf16, #tpu.memory_space<vmem>>, vector<1x128x128xbf16>
    %79 = vector.shape_cast %78 : vector<1x128x128xbf16> to vector<128x128xbf16>
    %cst_55 = arith.constant dense<0.000000e+00> : vector<32x128xf32>
    %80 = tpu.matmul %75, %79, %cst_55 {dimension_numbers = #tpu.dot_dimension_numbers<[1], [0], [0], [1], [0, 0, 1, 1], [], []>} : vector<32x128xbf16>, vector<128x128xbf16>, vector<32x128xf32> -> vector<32x128xf32>
    %c1_56 = arith.constant 1 : index
    %c0_57 = arith.constant 0 : index
    %c0_58 = arith.constant 0 : index
    %81 = vector.load %arg8[%c1_56, %c0_57, %c0_58] : memref<3x128x128xbf16, #tpu.memory_space<vmem>>, vector<1x128x128xbf16>
    %82 = vector.shape_cast %81 : vector<1x128x128xbf16> to vector<128x128xbf16>
    %cst_59 = arith.constant dense<0.000000e+00> : vector<32x128xf32>
    %83 = tpu.matmul %73, %82, %cst_59 {dimension_numbers = #tpu.dot_dimension_numbers<[1], [0], [0], [1], [0, 0, 1, 1], [], []>} : vector<32x128xbf16>, vector<128x128xbf16>, vector<32x128xf32> -> vector<32x128xf32>
    %84 = arith.addf %80, %83 : vector<32x128xf32>
    %c1_60 = arith.constant 1 : index
    %c0_61 = arith.constant 0 : index
    %c0_62 = arith.constant 0 : index
    %85 = vector.load %arg9[%c1_60, %c0_61, %c0_62] : memref<3x1x128xf32, #tpu.memory_space<vmem>>, vector<1x1x128xf32>
    %86 = vector.shape_cast %85 : vector<1x1x128xf32> to vector<1x128xf32>
    %87 = vector.broadcast %86 : vector<1x128xf32> to vector<32x128xf32>
    %88 = arith.addf %84, %87 : vector<32x128xf32>
    %cst_63 = arith.constant dense<0.000000e+00> : vector<16x128xf32>
    %89 = tpu.matmul %18, %88, %cst_63 {dimension_numbers = #tpu.dot_dimension_numbers<[1], [0], [0], [1], [0, 0, 1, 1], [], []>} : vector<16x32xf32>, vector<32x128xf32>, vector<16x128xf32> -> vector<16x128xf32>
    %c1_64 = arith.constant 1 : index
    %c0_65 = arith.constant 0 : index
    %c0_66 = arith.constant 0 : index
    %90 = vector.load %arg10[%c1_64, %c0_65, %c0_66] : memref<3x128x128xbf16, #tpu.memory_space<vmem>>, vector<1x128x128xbf16>
    %91 = vector.shape_cast %90 : vector<1x128x128xbf16> to vector<128x128xbf16>
    %cst_67 = arith.constant dense<0.000000e+00> : vector<16x128xf32>
    %92 = tpu.matmul %72, %91, %cst_67 {dimension_numbers = #tpu.dot_dimension_numbers<[1], [0], [0], [1], [0, 0, 1, 1], [], []>} : vector<16x128xbf16>, vector<128x128xbf16>, vector<16x128xf32> -> vector<16x128xf32>
    %c1_68 = arith.constant 1 : index
    %c0_69 = arith.constant 0 : index
    %c0_70 = arith.constant 0 : index
    %93 = vector.load %arg11[%c1_68, %c0_69, %c0_70] : memref<3x1x128xf32, #tpu.memory_space<vmem>>, vector<1x1x128xf32>
    %94 = vector.shape_cast %93 : vector<1x1x128xf32> to vector<1x128xf32>
    %95 = vector.broadcast %94 : vector<1x128xf32> to vector<16x128xf32>
    %96 = arith.addf %92, %95 : vector<16x128xf32>
    %97 = arith.addf %96, %89 : vector<16x128xf32>
    %c1_71 = arith.constant 1 : index
    %c0_72 = arith.constant 0 : index
    %c0_73 = arith.constant 0 : index
    %98 = vector.load %arg12[%c1_71, %c0_72, %c0_73] : memref<3x128x128xbf16, #tpu.memory_space<vmem>>, vector<1x128x128xbf16>
    %99 = vector.shape_cast %98 : vector<1x128x128xbf16> to vector<128x128xbf16>
    %cst_74 = arith.constant dense<0.000000e+00> : vector<32x128xf32>
    %100 = tpu.matmul %75, %99, %cst_74 {dimension_numbers = #tpu.dot_dimension_numbers<[1], [0], [0], [1], [0, 0, 1, 1], [], []>} : vector<32x128xbf16>, vector<128x128xbf16>, vector<32x128xf32> -> vector<32x128xf32>
    %c1_75 = arith.constant 1 : index
    %c0_76 = arith.constant 0 : index
    %c0_77 = arith.constant 0 : index
    %101 = vector.load %arg13[%c1_75, %c0_76, %c0_77] : memref<3x128x128xbf16, #tpu.memory_space<vmem>>, vector<1x128x128xbf16>
    %102 = vector.shape_cast %101 : vector<1x128x128xbf16> to vector<128x128xbf16>
    %cst_78 = arith.constant dense<0.000000e+00> : vector<32x128xf32>
    %103 = tpu.matmul %77, %102, %cst_78 {dimension_numbers = #tpu.dot_dimension_numbers<[1], [0], [0], [1], [0, 0, 1, 1], [], []>} : vector<32x128xbf16>, vector<128x128xbf16>, vector<32x128xf32> -> vector<32x128xf32>
    %104 = arith.addf %100, %103 : vector<32x128xf32>
    %c1_79 = arith.constant 1 : index
    %c0_80 = arith.constant 0 : index
    %c0_81 = arith.constant 0 : index
    %105 = vector.load %arg14[%c1_79, %c0_80, %c0_81] : memref<3x128x128xbf16, #tpu.memory_space<vmem>>, vector<1x128x128xbf16>
    %106 = vector.shape_cast %105 : vector<1x128x128xbf16> to vector<128x128xbf16>
    %cst_82 = arith.constant dense<0.000000e+00> : vector<32x128xf32>
    %107 = tpu.matmul %73, %106, %cst_82 {dimension_numbers = #tpu.dot_dimension_numbers<[1], [0], [0], [1], [0, 0, 1, 1], [], []>} : vector<32x128xbf16>, vector<128x128xbf16>, vector<32x128xf32> -> vector<32x128xf32>
    %108 = arith.addf %104, %107 : vector<32x128xf32>
    %c1_83 = arith.constant 1 : index
    %c0_84 = arith.constant 0 : index
    %c0_85 = arith.constant 0 : index
    %109 = vector.load %arg15[%c1_83, %c0_84, %c0_85] : memref<3x1x128xf32, #tpu.memory_space<vmem>>, vector<1x1x128xf32>
    %110 = vector.shape_cast %109 : vector<1x1x128xf32> to vector<1x128xf32>
    %111 = vector.broadcast %110 : vector<1x128xf32> to vector<32x128xf32>
    %112 = arith.addf %108, %111 : vector<32x128xf32>
    %cst_86 = arith.constant 0.000000e+00 : f32
    %113 = vector.broadcast %cst_86 : f32 to vector<16x128xf32>
    %114 = arith.maximumf %97, %113 : vector<16x128xf32>
    %cst_87 = arith.constant 0.000000e+00 : f32
    %115 = vector.broadcast %cst_87 : f32 to vector<32x128xf32>
    %116 = arith.maximumf %112, %115 : vector<32x128xf32>
    %117 = arith.truncf %114 : vector<16x128xf32> to vector<16x128xbf16>
    %118 = arith.truncf %116 : vector<32x128xf32> to vector<32x128xbf16>
    %cst_88 = arith.constant dense<0.000000e+00> : vector<32x128xf32>
    %119 = tpu.matmul %6, %117, %cst_88 {dimension_numbers = #tpu.dot_dimension_numbers<[1], [0], [0], [1], [0, 0, 1, 1], [], []>} : vector<32x16xbf16>, vector<16x128xbf16>, vector<32x128xf32> -> vector<32x128xf32>
    %120 = arith.truncf %119 : vector<32x128xf32> to vector<32x128xbf16>
    %c2 = arith.constant 2 : index
    %c0_89 = arith.constant 0 : index
    %c0_90 = arith.constant 0 : index
    %121 = vector.load %arg7[%c2, %c0_89, %c0_90] : memref<3x128x128xbf16, #tpu.memory_space<vmem>>, vector<1x128x128xbf16>
    %122 = vector.shape_cast %121 : vector<1x128x128xbf16> to vector<128x128xbf16>
    %cst_91 = arith.constant dense<0.000000e+00> : vector<32x128xf32>
    %123 = tpu.matmul %120, %122, %cst_91 {dimension_numbers = #tpu.dot_dimension_numbers<[1], [0], [0], [1], [0, 0, 1, 1], [], []>} : vector<32x128xbf16>, vector<128x128xbf16>, vector<32x128xf32> -> vector<32x128xf32>
    %c2_92 = arith.constant 2 : index
    %c0_93 = arith.constant 0 : index
    %c0_94 = arith.constant 0 : index
    %124 = vector.load %arg8[%c2_92, %c0_93, %c0_94] : memref<3x128x128xbf16, #tpu.memory_space<vmem>>, vector<1x128x128xbf16>
    %125 = vector.shape_cast %124 : vector<1x128x128xbf16> to vector<128x128xbf16>
    %cst_95 = arith.constant dense<0.000000e+00> : vector<32x128xf32>
    %126 = tpu.matmul %118, %125, %cst_95 {dimension_numbers = #tpu.dot_dimension_numbers<[1], [0], [0], [1], [0, 0, 1, 1], [], []>} : vector<32x128xbf16>, vector<128x128xbf16>, vector<32x128xf32> -> vector<32x128xf32>
    %127 = arith.addf %123, %126 : vector<32x128xf32>
    %c2_96 = arith.constant 2 : index
    %c0_97 = arith.constant 0 : index
    %c0_98 = arith.constant 0 : index
    %128 = vector.load %arg9[%c2_96, %c0_97, %c0_98] : memref<3x1x128xf32, #tpu.memory_space<vmem>>, vector<1x1x128xf32>
    %129 = vector.shape_cast %128 : vector<1x1x128xf32> to vector<1x128xf32>
    %130 = vector.broadcast %129 : vector<1x128xf32> to vector<32x128xf32>
    %131 = arith.addf %127, %130 : vector<32x128xf32>
    %cst_99 = arith.constant dense<0.000000e+00> : vector<16x128xf32>
    %132 = tpu.matmul %18, %131, %cst_99 {dimension_numbers = #tpu.dot_dimension_numbers<[1], [0], [0], [1], [0, 0, 1, 1], [], []>} : vector<16x32xf32>, vector<32x128xf32>, vector<16x128xf32> -> vector<16x128xf32>
    %c2_100 = arith.constant 2 : index
    %c0_101 = arith.constant 0 : index
    %c0_102 = arith.constant 0 : index
    %133 = vector.load %arg10[%c2_100, %c0_101, %c0_102] : memref<3x128x128xbf16, #tpu.memory_space<vmem>>, vector<1x128x128xbf16>
    %134 = vector.shape_cast %133 : vector<1x128x128xbf16> to vector<128x128xbf16>
    %cst_103 = arith.constant dense<0.000000e+00> : vector<16x128xf32>
    %135 = tpu.matmul %117, %134, %cst_103 {dimension_numbers = #tpu.dot_dimension_numbers<[1], [0], [0], [1], [0, 0, 1, 1], [], []>} : vector<16x128xbf16>, vector<128x128xbf16>, vector<16x128xf32> -> vector<16x128xf32>
    %c2_104 = arith.constant 2 : index
    %c0_105 = arith.constant 0 : index
    %c0_106 = arith.constant 0 : index
    %136 = vector.load %arg11[%c2_104, %c0_105, %c0_106] : memref<3x1x128xf32, #tpu.memory_space<vmem>>, vector<1x1x128xf32>
    %137 = vector.shape_cast %136 : vector<1x1x128xf32> to vector<1x128xf32>
    %138 = vector.broadcast %137 : vector<1x128xf32> to vector<16x128xf32>
    %139 = arith.addf %135, %138 : vector<16x128xf32>
    %140 = arith.addf %139, %132 : vector<16x128xf32>
    %c0_107 = arith.constant 0 : index
    %c0_108 = arith.constant 0 : index
    %141 = vector.load %arg16[%c0_107, %c0_108] : memref<16x128xf32, #tpu.memory_space<vmem>>, vector<16x128xf32>
    tpu.vector_store %arg16[%c0_107, %c0_108], %140 {strides = array<i32>} : memref<16x128xf32, #tpu.memory_space<vmem>>, vector<16x128xf32>,
    return
  }
}

</mosaic_0001>

<llo_original>
// kernel: tpu_custom_call.1
$region0: #{tpu_custom_call.1}
  #allocation0 [shape = 'u32[]', space=smem, size = 0x4, offset = 0x4, fixed_abs, tag = 'smem constant byte address 0x4 - core index']
  #allocation1 [shape = 'u32[72,128]{1,0:T(1,128)}', space=vmem, size = 0x9000, scoped, tag = 'internal scratch']
  %s0 = inlined_call_operand.hbm [shape: f32[16,128], index: 0, kind: input, shape index: {}]
  %s1 = inlined_call_operand.hbm [shape: f32[32,128], index: 1, kind: input, shape index: {}]
  %s2 = inlined_call_operand.vmem [shape: s32[32,1], index: 2, kind: input, shape index: {}]
  %s3 = inlined_call_operand.vmem [shape: s32[32,1], index: 3, kind: input, shape index: {}]
  %s4 = inlined_call_operand.vmem [shape: s32[1,32], index: 4, kind: input, shape index: {}]
  %s5 = inlined_call_operand.vmem [shape: bf16[128,128], index: 5, kind: input, shape index: {}]
  %s6 = inlined_call_operand.hbm [shape: f32[1,128], index: 6, kind: input, shape index: {}]
  %s7 = inlined_call_operand.hbm [shape: bf16[3,128,128], index: 7, kind: input, shape index: {}]
  %s8 = inlined_call_operand.hbm [shape: bf16[3,128,128], index: 8, kind: input, shape index: {}]
  %s9 = inlined_call_operand.vmem [shape: f32[3,1,128], index: 9, kind: input, shape index: {}]
  %s10 = inlined_call_operand.hbm [shape: bf16[3,128,128], index: 10, kind: input, shape index: {}]
  %s11 = inlined_call_operand.vmem [shape: f32[3,1,128], index: 11, kind: input, shape index: {}]
  %s12 = inlined_call_operand.hbm [shape: bf16[3,128,128], index: 12, kind: input, shape index: {}]
  %s13 = inlined_call_operand.hbm [shape: bf16[3,128,128], index: 13, kind: input, shape index: {}]
  %s14 = inlined_call_operand.hbm [shape: bf16[3,128,128], index: 14, kind: input, shape index: {}]
  %s15 = inlined_call_operand.vmem [shape: f32[3,1,128], index: 15, kind: input, shape index: {}]
  %s16 = inlined_call_operand.hbm [shape: f32[16,128], index: 16, kind: output, shape index: {}]
  %s17 = sld [smem:[#allocation0]]
  $region110: #{tpu_custom_call.1} parent=0
    _
  %s19 = ssub.s32 1, %s17
  %s20 = scalar_select 0, %s19, %s17
  $region1: #{tpu_custom_call.1} parent=0
    #allocation2 [shape = 'u8[8192]{0}', space=vmem, size = 0x2000, scoped, tag = 'input window, operand 0, single buffered']
    #allocation3 [shape = 's32[1]{0}', space=sflag, size = 0x4, scoped, tag = 'scoped memory for tpu_custom_call.1']
    #allocation4 [shape = 's32[1]{0}', space=sflag, size = 0x4, scoped, tag = 'scoped memory for tpu_custom_call.1']
    #allocation5 [shape = 'u8[16384]{0}', space=vmem, size = 0x4000, scoped, tag = 'input window, operand 1, single buffered']
    #allocation6 [shape = 's32[1]{0}', space=sflag, size = 0x4, scoped, tag = 'scoped memory for tpu_custom_call.1']
    #allocation7 [shape = 'u8[512]{0}', space=vmem, size = 0x400, scoped, tag = 'input window, operand 6, single buffered']
    #allocation8 [shape = 'u8[98304]{0}', space=vmem, size = 0x18000, scoped, tag = 'input window, operand 7, single buffered']
    #allocation9 [shape = 's32[1]{0}', space=sflag, size = 0x4, scoped, tag = 'scoped memory for tpu_custom_call.1']
    #allocation10 [shape = 'u8[98304]{0}', space=vmem, size = 0x18000, scoped, tag = 'input window, operand 8, single buffered']
    #allocation11 [shape = 'u8[98304]{0}', space=vmem, size = 0x18000, scoped, tag = 'input window, operand 10, single buffered']
    #allocation12 [shape = 's32[1]{0}', space=sflag, size = 0x4, scoped, tag = 'scoped memory for tpu_custom_call.1']
    #allocation13 [shape = 'u8[98304]{0}', space=vmem, size = 0x18000, scoped, tag = 'input window, operand 12, single buffered']
    #allocation14 [shape = 'u8[98304]{0}', space=vmem, size = 0x18000, scoped, tag = 'input window, operand 13, single buffered']
    #allocation15 [shape = 's32[1]{0}', space=sflag, size = 0x4, scoped, tag = 'scoped memory for tpu_custom_call.1']
    #allocation16 [shape = 'u8[98304]{0}', space=vmem, size = 0x18000, scoped, tag = 'input window, operand 14, single buffered']
    #allocation17 [shape = 'u8[8192]{0}', space=vmem, size = 0x2000, scoped, tag = 'output window, operand 0, single buffered']
    %21 = vsyncpa [#allocation3], 0
    %22 = vsyncpa [#allocation6], 0
    %23 = vsyncpa [#allocation9], 0
    %24 = vsyncpa [#allocation12], 0
    %25 = vsyncpa [#allocation15], 0
    %26 = vsyncpa [#allocation4], 0
    // Predicated region
    $region2: #{tpu_custom_call.1} parent=1 // pred_check
      _
    $region3: #{tpu_custom_call.1} parent=1 // pred_check_branch
      %28 = sbr.rel (0) target = $region5
    $region4: #{tpu_custom_call.1} parent=1 // pred_region
      %30 = vsyncadd [#allocation3], 0
      %s31 = sshll.u32 %s0, 4
      %s32 = int_to_ptr.hbm [resolvable:$true] %s31
      %s33 = sshll.u32 [#allocation2], 4
      %s34 = int_to_ptr.vmem [resolvable:$true] %s33
      %39 = dma.hbm_to_vmem [thread:$0]  %s32, 256, %s34, [#allocation3], 128, 128, 8
    $region5: #{tpu_custom_call.1} parent=1 // pred_fallthru
      _
    // Predicated region
    $region6: #{tpu_custom_call.1} parent=1 // pred_check
      _
    $region7: #{tpu_custom_call.1} parent=1 // pred_check_branch
      %41 = sbr.rel (0) target = $region9
    $region8: #{tpu_custom_call.1} parent=1 // pred_region
      %43 = vsyncadd [#allocation6], 0
      %s44 = sshll.u32 %s1, 4
      %s45 = int_to_ptr.hbm [resolvable:$true] %s44
      %s46 = sshll.u32 [#allocation5], 4
      %s47 = int_to_ptr.vmem [resolvable:$true] %s46
      %52 = dma.hbm_to_vmem [thread:$0]  %s45, 512, %s47, [#allocation6], 128, 128, 8
    $region9: #{tpu_custom_call.1} parent=1 // pred_fallthru
      _
    // Predicated region
    $region10: #{tpu_custom_call.1} parent=1 // pred_check
      _
    $region11: #{tpu_custom_call.1} parent=1 // pred_check_branch
      %54 = sbr.rel (0) target = $region13
    $region12: #{tpu_custom_call.1} parent=1 // pred_region
      _
    $region13: #{tpu_custom_call.1} parent=1 // pred_fallthru
      _
    // Predicated region
    $region14: #{tpu_custom_call.1} parent=1 // pred_check
      _
    $region15: #{tpu_custom_call.1} parent=1 // pred_check_branch
      %56 = sbr.rel (0) target = $region17
    $region16: #{tpu_custom_call.1} parent=1 // pred_region
      _
    $region17: #{tpu_custom_call.1} parent=1 // pred_fallthru
      _
    // Predicated region
    $region18: #{tpu_custom_call.1} parent=1 // pred_check
      _
    $region19: #{tpu_custom_call.1} parent=1 // pred_check_branch
      %58 = sbr.rel (0) target = $region21
    $region20: #{tpu_custom_call.1} parent=1 // pred_region
      _
    $region21: #{tpu_custom_call.1} parent=1 // pred_fallthru
      _
    // Predicated region
    $region22: #{tpu_custom_call.1} parent=1 // pred_check
      _
    $region23: #{tpu_custom_call.1} parent=1 // pred_check_branch
      %60 = sbr.rel (0) target = $region25
    $region24: #{tpu_custom_call.1} parent=1 // pred_region
      _
    $region25: #{tpu_custom_call.1} parent=1 // pred_fallthru
      _
    // Predicated region
    $region26: #{tpu_custom_call.1} parent=1 // pred_check
      _
    $region27: #{tpu_custom_call.1} parent=1 // pred_check_branch
      %62 = sbr.rel (0) target = $region29
    $region28: #{tpu_custom_call.1} parent=1 // pred_region
      %64 = vsyncadd [#allocation6], 0
      %s66 = sshll.u32 %s6, 4
      %s67 = int_to_ptr.hbm [resolvable:$true] %s66
      %s68 = sshll.u32 [#allocation7], 4
      %s69 = int_to_ptr.vmem [resolvable:$true] %s68
      %71 = dma.hbm_to_vmem [thread:$0]  %s67, 16, %s69, [#allocation6]
    $region29: #{tpu_custom_call.1} parent=1 // pred_fallthru
      _
    // Predicated region
    $region30: #{tpu_custom_call.1} parent=1 // pred_check
      _
    $region31: #{tpu_custom_call.1} parent=1 // pred_check_branch
      %73 = sbr.rel (0) target = $region33
    $region32: #{tpu_custom_call.1} parent=1 // pred_region
      %75 = vsyncadd [#allocation9], 0
      %s76 = sshll.u32 %s7, 4
      %s77 = int_to_ptr.hbm [resolvable:$true] %s76
      %s78 = sshll.u32 [#allocation8], 4
      %s79 = int_to_ptr.vmem [resolvable:$true] %s78
      %84 = dma.hbm_to_vmem [thread:$0]  %s77, 3072, %s79, [#allocation9], 64, 64, 4
    $region33: #{tpu_custom_call.1} parent=1 // pred_fallthru
      _
    // Predicated region
    $region34: #{tpu_custom_call.1} parent=1 // pred_check
      _
    $region35: #{tpu_custom_call.1} parent=1 // pred_check_branch
      %86 = sbr.rel (0) target = $region37
    $region36: #{tpu_custom_call.1} parent=1 // pred_region
      %88 = vsyncadd [#allocation9], 0
      %s89 = sshll.u32 %s8, 4
      %s90 = int_to_ptr.hbm [resolvable:$true] %s89
      %s91 = sshll.u32 [#allocation10], 4
      %s92 = int_to_ptr.vmem [resolvable:$true] %s91
      %97 = dma.hbm_to_vmem [thread:$0]  %s90, 3072, %s92, [#allocation9], 64, 64, 4
    $region37: #{tpu_custom_call.1} parent=1 // pred_fallthru
      _
    // Predicated region
    $region38: #{tpu_custom_call.1} parent=1 // pred_check
      _
    $region39: #{tpu_custom_call.1} parent=1 // pred_check_branch
      %99 = sbr.rel (0) target = $region41
    $region40: #{tpu_custom_call.1} parent=1 // pred_region
      _
    $region41: #{tpu_custom_call.1} parent=1 // pred_fallthru
      _
    // Predicated region
    $region42: #{tpu_custom_call.1} parent=1 // pred_check
      _
    $region43: #{tpu_custom_call.1} parent=1 // pred_check_branch
      %101 = sbr.rel (0) target = $region45
    $region44: #{tpu_custom_call.1} parent=1 // pred_region
      %103 = vsyncadd [#allocation12], 0
      %s104 = sshll.u32 %s10, 4
      %s105 = int_to_ptr.hbm [resolvable:$true] %s104
      %s106 = sshll.u32 [#allocation11], 4
      %s107 = int_to_ptr.vmem [resolvable:$true] %s106
      %112 = dma.hbm_to_vmem [thread:$0]  %s105, 3072, %s107, [#allocation12], 64, 64, 4
    $region45: #{tpu_custom_call.1} parent=1 // pred_fallthru
      _
    // Predicated region
    $region46: #{tpu_custom_call.1} parent=1 // pred_check
      _
    $region47: #{tpu_custom_call.1} parent=1 // pred_check_branch
      %114 = sbr.rel (0) target = $region49
    $region48: #{tpu_custom_call.1} parent=1 // pred_region
      _
    $region49: #{tpu_custom_call.1} parent=1 // pred_fallthru
      _
    // Predicated region
    $region50: #{tpu_custom_call.1} parent=1 // pred_check
      _
    $region51: #{tpu_custom_call.1} parent=1 // pred_check_branch
      %116 = sbr.rel (0) target = $region53
    $region52: #{tpu_custom_call.1} parent=1 // pred_region
      %118 = vsyncadd [#allocation12], 0
      %s119 = sshll.u32 %s12, 4
      %s120 = int_to_ptr.hbm [resolvable:$true] %s119
      %s121 = sshll.u32 [#allocation13], 4
      %s122 = int_to_ptr.vmem [resolvable:$true] %s121
      %127 = dma.hbm_to_vmem [thread:$0]  %s120, 3072, %s122, [#allocation12], 64, 64, 4
    $region53: #{tpu_custom_call.1} parent=1 // pred_fallthru
      _
    // Predicated region
    $region54: #{tpu_custom_call.1} parent=1 // pred_check
      _
    $region55: #{tpu_custom_call.1} parent=1 // pred_check_branch
      %129 = sbr.rel (0) target = $region57
    $region56: #{tpu_custom_call.1} parent=1 // pred_region
      %131 = vsyncadd [#allocation15], 0
      %s132 = sshll.u32 %s13, 4
      %s133 = int_to_ptr.hbm [resolvable:$true] %s132
      %s134 = sshll.u32 [#allocation14], 4
      %s135 = int_to_ptr.vmem [resolvable:$true] %s134
      %140 = dma.hbm_to_vmem [thread:$0]  %s133, 3072, %s135, [#allocation15], 64, 64, 4
    $region57: #{tpu_custom_call.1} parent=1 // pred_fallthru
      _
    // Predicated region
    $region58: #{tpu_custom_call.1} parent=1 // pred_check
      _
    $region59: #{tpu_custom_call.1} parent=1 // pred_check_branch
      %142 = sbr.rel (0) target = $region61
    $region60: #{tpu_custom_call.1} parent=1 // pred_region
      %144 = vsyncadd [#allocation15], 0
      %s145 = sshll.u32 %s14, 4
      %s146 = int_to_ptr.hbm [resolvable:$true] %s145
      %s147 = sshll.u32 [#allocation16], 4
      %s148 = int_to_ptr.vmem [resolvable:$true] %s147
      %153 = dma.hbm_to_vmem [thread:$0]  %s146, 3072, %s148, [#allocation15], 64, 64, 4
    $region61: #{tpu_custom_call.1} parent=1 // pred_fallthru
      _
    // Predicated region
    $region62: #{tpu_custom_call.1} parent=1 // pred_check
      _
    $region63: #{tpu_custom_call.1} parent=1 // pred_check_branch
      %155 = sbr.rel (0) target = $region65
    $region64: #{tpu_custom_call.1} parent=1 // pred_region
      _
    $region65: #{tpu_custom_call.1} parent=1 // pred_fallthru
      _
    // Predicated region
    $region66: #{tpu_custom_call.1} parent=1 // pred_check
      _
    $region67: #{tpu_custom_call.1} parent=1 // pred_check_branch
      %157 = sbr.rel (0) target = $region69
    $region68: #{tpu_custom_call.1} parent=1 // pred_region
      %159 = dma.done [#allocation3], 256
    $region69: #{tpu_custom_call.1} parent=1 // pred_fallthru
      _
    // Predicated region
    $region70: #{tpu_custom_call.1} parent=1 // pred_check
      _
    $region71: #{tpu_custom_call.1} parent=1 // pred_check_branch
      %161 = sbr.rel (0) target = $region73
    $region72: #{tpu_custom_call.1} parent=1 // pred_region
      %163 = dma.done [#allocation6], 512
    $region73: #{tpu_custom_call.1} parent=1 // pred_fallthru
      _
    // Predicated region
    $region74: #{tpu_custom_call.1} parent=1 // pred_check
      _
    $region75: #{tpu_custom_call.1} parent=1 // pred_check_branch
      %165 = sbr.rel (0) target = $region77
    $region76: #{tpu_custom_call.1} parent=1 // pred_region
      %167 = dma.done [#allocation6], 16
    $region77: #{tpu_custom_call.1} parent=1 // pred_fallthru
      _
    // Predicated region
    $region78: #{tpu_custom_call.1} parent=1 // pred_check
      _
    $region79: #{tpu_custom_call.1} parent=1 // pred_check_branch
      %169 = sbr.rel (0) target = $region81
    $region80: #{tpu_custom_call.1} parent=1 // pred_region
      %171 = dma.done [#allocation9], 3072
    $region81: #{tpu_custom_call.1} parent=1 // pred_fallthru
      _
    // Predicated region
    $region82: #{tpu_custom_call.1} parent=1 // pred_check
      _
    $region83: #{tpu_custom_call.1} parent=1 // pred_check_branch
      %173 = sbr.rel (0) target = $region85
    $region84: #{tpu_custom_call.1} parent=1 // pred_region
      %175 = dma.done [#allocation9], 3072
    $region85: #{tpu_custom_call.1} parent=1 // pred_fallthru
      _
    // Predicated region
    $region86: #{tpu_custom_call.1} parent=1 // pred_check
      _
    $region87: #{tpu_custom_call.1} parent=1 // pred_check_branch
      %177 = sbr.rel (0) target = $region89
    $region88: #{tpu_custom_call.1} parent=1 // pred_region
      %179 = dma.done [#allocation12], 3072
    $region89: #{tpu_custom_call.1} parent=1 // pred_fallthru
      _
    // Predicated region
    $region90: #{tpu_custom_call.1} parent=1 // pred_check
      _
    $region91: #{tpu_custom_call.1} parent=1 // pred_check_branch
      %181 = sbr.rel (0) target = $region93
    $region92: #{tpu_custom_call.1} parent=1 // pred_region
      %183 = dma.done [#allocation12], 3072
    $region93: #{tpu_custom_call.1} parent=1 // pred_fallthru
      _
    // Predicated region
    $region94: #{tpu_custom_call.1} parent=1 // pred_check
      _
    $region95: #{tpu_custom_call.1} parent=1 // pred_check_branch
      %185 = sbr.rel (0) target = $region97
    $region96: #{tpu_custom_call.1} parent=1 // pred_region
      %187 = dma.done [#allocation15], 3072
    $region97: #{tpu_custom_call.1} parent=1 // pred_fallthru
      _
    // Predicated region
    $region98: #{tpu_custom_call.1} parent=1 // pred_check
      _
    $region99: #{tpu_custom_call.1} parent=1 // pred_check_branch
      %189 = sbr.rel (0) target = $region101
    $region100: #{tpu_custom_call.1} parent=1 // pred_region
      %191 = dma.done [#allocation15], 3072
    $region101: #{tpu_custom_call.1} parent=1 // pred_fallthru
      _
    %v193 = vlaneseq
    %v194 = vand.u32 %v193, 127
    %v195 = vld [vmem:[%s2] sm:$0xff]
    %v196 = vld [vmem:[%s2 + $0x8] sm:$0xff]
    %v197 = vld [vmem:[%s2 + $0x10] sm:$0xff]
    %v198 = vld [vmem:[%s2 + $0x18] sm:$0xff]
    %199 = vset.pattern.permute.xlu0 0
    %200 = vperm.xlu0 %199, %v195
    %v201 = vpop.permute.xlu0 %200
    %202 = vset.pattern.permute.xlu0 0
    %203 = vperm.xlu0 %202, %v196
    %v204 = vpop.permute.xlu0 %203
    %205 = vset.pattern.permute.xlu0 0
    %206 = vperm.xlu0 %205, %v197
    %v207 = vpop.permute.xlu0 %206
    %208 = vset.pattern.permute.xlu0 0
    %209 = vperm.xlu0 %208, %v198
    %v210 = vpop.permute.xlu0 %209
    %vm211 = vcmp.eq.s32.totalorder %v194, %v201
    %vm212 = vcmp.eq.s32.totalorder %v194, %v204
    %vm213 = vcmp.eq.s32.totalorder %v194, %v207
    %vm214 = vcmp.eq.s32.totalorder %v194, %v210
    %v215 = vsel %vm211, 1, 0
    %v216 = vsel %vm212, 1, 0
    %v217 = vsel %vm213, 1, 0
    %v218 = vsel %vm214, 1, 0
    %v219 = vcvt.s32.f32 %v215
    %v220 = vcvt.s32.f32 %v216
    %v221 = vcvt.s32.f32 %v217
    %v222 = vcvt.s32.f32 %v218
    %v223 = vpack.c.bf16 %v220, %v219
    %v224 = vpack.c.bf16 %v222, %v221
    %v225 = vld [vmem:[%s3] sm:$0xff]
    %v226 = vld [vmem:[%s3 + $0x8] sm:$0xff]
    %v227 = vld [vmem:[%s3 + $0x10] sm:$0xff]
    %v228 = vld [vmem:[%s3 + $0x18] sm:$0xff]
    %229 = vset.pattern.permute.xlu0 0
    %230 = vperm.xlu0 %229, %v225
    %v231 = vpop.permute.xlu0 %230
    %232 = vset.pattern.permute.xlu0 0
    %233 = vperm.xlu0 %232, %v226
    %v234 = vpop.permute.xlu0 %233
    %235 = vset.pattern.permute.xlu0 0
    %236 = vperm.xlu0 %235, %v227
    %v237 = vpop.permute.xlu0 %236
    %238 = vset.pattern.permute.xlu0 0
    %239 = vperm.xlu0 %238, %v228
    %v240 = vpop.permute.xlu0 %239
    %vm241 = vcmp.eq.s32.totalorder %v194, %v231
    %vm242 = vcmp.eq.s32.totalorder %v194, %v234
    %vm243 = vcmp.eq.s32.totalorder %v194, %v237
    %vm244 = vcmp.eq.s32.totalorder %v194, %v240
    %v245 = vsel %vm241, 1, 0
    %v246 = vsel %vm242, 1, 0
    %v247 = vsel %vm243, 1, 0
    %v248 = vsel %vm244, 1, 0
    %v249 = vcvt.s32.f32 %v245
    %v250 = vcvt.s32.f32 %v246
    %v251 = vcvt.s32.f32 %v247
    %v252 = vcvt.s32.f32 %v248
    %v253 = vpack.c.bf16 %v250, %v249
    %v254 = vpack.c.bf16 %v252, %v251
    %v255 = vlaneseq
    %v256 = vshrl.u32 %v255, 7
    %v257 = vadd.s32 %v256, 8
    %v258 = vld [vmem:[%s4] sm:$0x1]
    %v259 = vperm.slane %v258, 0
    %vm260 = vcmp.eq.s32.totalorder %v256, %v259
    %vm261 = vcmp.eq.s32.totalorder %v257, %v259
    %v262 = vsel %vm260, 1, 0
    %v263 = vsel %vm261, 1, 0
    %v264 = vcvt.s32.f32 %v262
    %v265 = vcvt.s32.f32 %v263
    %v266 = vld [vmem:[#allocation5] sm:$0xff]
    %v267 = vld [vmem:[#allocation5 + $0x8] sm:$0xff]
    %v268 = vld [vmem:[#allocation5 + $0x10] sm:$0xff]
    %v269 = vld [vmem:[#allocation5 + $0x18] sm:$0xff]
    %v270 = vpack.c.bf16 %v267, %v266
    %v271 = vpack.c.bf16 %v269, %v268
    %v272 = vld [vmem:[%s5] sm:$0xf]
    %v273 = vld [vmem:[%s5 + $0x4] sm:$0xf]
    %v274 = vld [vmem:[%s5 + $0x8] sm:$0xf]
    %v275 = vld [vmem:[%s5 + $0xc] sm:$0xf]
    %v276 = vld [vmem:[%s5 + $0x10] sm:$0xf]
    %v277 = vld [vmem:[%s5 + $0x14] sm:$0xf]
    %v278 = vld [vmem:[%s5 + $0x18] sm:$0xf]
    %v279 = vld [vmem:[%s5 + $0x1c] sm:$0xf]
    %v280 = vld [vmem:[%s5 + $0x20] sm:$0xf]
    %v281 = vld [vmem:[%s5 + $0x24] sm:$0xf]
    %v282 = vld [vmem:[%s5 + $0x28] sm:$0xf]
    %v283 = vld [vmem:[%s5 + $0x2c] sm:$0xf]
    %v284 = vld [vmem:[%s5 + $0x30] sm:$0xf]
    %v285 = vld [vmem:[%s5 + $0x34] sm:$0xf]
    %v286 = vld [vmem:[%s5 + $0x38] sm:$0xf]
    %v287 = vld [vmem:[%s5 + $0x3c] sm:$0xf]
    %v288 = vld [vmem:[#allocation7] sm:$0x1]
    %v290 = vperm.slane %v288, 0
    %v308 = vunpack.c.l.b16 %v272
    %v309 = vunpack.c.l.b16 %v273
    %v310 = vunpack.c.l.b16 %v274
    %v311 = vunpack.c.l.b16 %v275
    %v312 = vunpack.c.l.b16 %v276
    %v313 = vunpack.c.l.b16 %v277
    %v314 = vunpack.c.l.b16 %v278
    %v315 = vunpack.c.l.b16 %v279
    %v316 = vunpack.c.l.b16 %v280
    %v317 = vunpack.c.l.b16 %v281
    %v318 = vunpack.c.l.b16 %v282
    %v319 = vunpack.c.l.b16 %v283
    %v320 = vunpack.c.l.b16 %v284
    %v321 = vunpack.c.l.b16 %v285
    %v322 = vunpack.c.l.b16 %v286
    %v323 = vunpack.c.l.b16 %v287
    %v324 = vpack.c.b16 %v309, %v308
    %v325 = vpack.c.b16 %v311, %v310
    %v326 = vpack.c.b16 %v313, %v312
    %v327 = vpack.c.b16 %v315, %v314
    %v328 = vpack.c.b16 %v317, %v316
    %v329 = vpack.c.b16 %v319, %v318
    %v330 = vpack.c.b16 %v321, %v320
    %v331 = vpack.c.b16 %v323, %v322
    %340 = vmatpush.bf16.msra.mxu0 %v331
    %341 = vmatpush.bf16.msra.mxu0 %v330
    %342 = vmatpush.bf16.msra.mxu0 %v329
    %343 = vmatpush.bf16.msra.mxu0 %v328
    %344 = vmatpush.bf16.msra.mxu0 %v327
    %345 = vmatpush.bf16.msra.mxu0 %v326
    %346 = vmatpush.bf16.msra.mxu0 %v325
    %347 = vmatpush.bf16.msra.mxu0 %v324
    %348 = vmatmul.bf16.gmra.mxu0 %v270
    %v349 = vpop.f32.mrf.mxu0
    %v350 = vadd.f32 %v290, %v349
    %v351 = vpop.f32.mrf.mxu0
    %v352 = vadd.f32 %v290, %v351
    %353 = vmatmul.bf16.gmra.mxu0 %v271
    %v354 = vpop.f32.mrf.mxu0
    %v355 = vadd.f32 %v290, %v354
    %v356 = vpop.f32.mrf.mxu0
    %v357 = vadd.f32 %v290, %v356
    %358 = vdwg.mxu0
    %v359 = vld [vmem:[#allocation2] sm:$0xff]
    %v360 = vld [vmem:[#allocation2 + $0x8] sm:$0xff]
    %v361 = vpack.c.bf16 %v360, %v359
    %v362 = vpack.c.bf16 %v352, %v350
    %v363 = vpack.c.bf16 %v357, %v355
    %vm364 = vcmask 130048
    %v366 = vsel %vm364, %v223, 0
    %v369 = vsel %vm364, %v224, 0
    %371 = vmatpush.bf16.msra.mxu0 0
    %372 = vmatpush.bf16.msra.mxu0 0
    %373 = vmatpush.bf16.msra.mxu0 0
    %374 = vmatpush.bf16.msra.mxu0 0
    %375 = vmatpush.bf16.msra.mxu0 0
    %376 = vmatpush.bf16.msra.mxu0 0
    %377 = vmatpush.bf16.msra.mxu0 0
    %378 = vmatpush.bf16.msra.mxu0 %v361
    %379 = vmatmul.bf16.gmra.mxu0 %v366
    %v380 = vpop.f32.mrf.mxu0
    %v381 = vadd.f32 0.0, %v380
    %v382 = vpop.f32.mrf.mxu0
    %v383 = vadd.f32 0.0, %v382
    %384 = vmatmul.bf16.gmra.mxu0 %v369
    %v385 = vpop.f32.mrf.mxu0
    %v386 = vadd.f32 0.0, %v385
    %v387 = vpop.f32.mrf.mxu0
    %v388 = vadd.f32 0.0, %v387
    %389 = vdwg.mxu0
    %v390 = vpack.c.bf16 %v383, %v381
    %v391 = vpack.c.bf16 %v388, %v386
    %v393 = vsel %vm364, %v253, 0
    %v396 = vsel %vm364, %v254, 0
    %398 = vmatpush.bf16.msra.mxu0 0
    %399 = vmatpush.bf16.msra.mxu0 0
    %400 = vmatpush.bf16.msra.mxu0 0
    %401 = vmatpush.bf16.msra.mxu0 0
    %402 = vmatpush.bf16.msra.mxu0 0
    %403 = vmatpush.bf16.msra.mxu0 0
    %404 = vmatpush.bf16.msra.mxu0 0
    %405 = vmatpush.bf16.msra.mxu0 %v361
    %406 = vmatmul.bf16.gmra.mxu0 %v393
    %v407 = vpop.f32.mrf.mxu0
    %v408 = vadd.f32 0.0, %v407
    %v409 = vpop.f32.mrf.mxu0
    %v410 = vadd.f32 0.0, %v409
    %411 = vmatmul.bf16.gmra.mxu0 %v396
    %v412 = vpop.f32.mrf.mxu0
    %v413 = vadd.f32 0.0, %v412
    %v414 = vpop.f32.mrf.mxu0
    %v415 = vadd.f32 0.0, %v414
    %416 = vdwg.mxu0
    %v417 = vpack.c.bf16 %v410, %v408
    %v418 = vpack.c.bf16 %v415, %v413
    %v419 = vld [vmem:[#allocation8] sm:$0xf]
    %v420 = vld [vmem:[#allocation8 + $0x4] sm:$0xf]
    %v421 = vld [vmem:[#allocation8 + $0x8] sm:$0xf]
    %v422 = vld [vmem:[#allocation8 + $0xc] sm:$0xf]
    %v423 = vld [vmem:[#allocation8 + $0x10] sm:$0xf]
    %v424 = vld [vmem:[#allocation8 + $0x14] sm:$0xf]
    %v425 = vld [vmem:[#allocation8 + $0x18] sm:$0xf]
    %v426 = vld [vmem:[#allocation8 + $0x1c] sm:$0xf]
    %v427 = vld [vmem:[#allocation8 + $0x20] sm:$0xf]
    %v428 = vld [vmem:[#allocation8 + $0x24] sm:$0xf]
    %v429 = vld [vmem:[#allocation8 + $0x28] sm:$0xf]
    %v430 = vld [vmem:[#allocation8 + $0x2c] sm:$0xf]
    %v431 = vld [vmem:[#allocation8 + $0x30] sm:$0xf]
    %v432 = vld [vmem:[#allocation8 + $0x34] sm:$0xf]
    %v433 = vld [vmem:[#allocation8 + $0x38] sm:$0xf]
    %v434 = vld [vmem:[#allocation8 + $0x3c] sm:$0xf]
    %v435 = vld [vmem:[#allocation10] sm:$0xf]
    %v436 = vld [vmem:[#allocation10 + $0x4] sm:$0xf]
    %v437 = vld [vmem:[#allocation10 + $0x8] sm:$0xf]
    %v438 = vld [vmem:[#allocation10 + $0xc] sm:$0xf]
    %v439 = vld [vmem:[#allocation10 + $0x10] sm:$0xf]
    %v440 = vld [vmem:[#allocation10 + $0x14] sm:$0xf]
    %v441 = vld [vmem:[#allocation10 + $0x18] sm:$0xf]
    %v442 = vld [vmem:[#allocation10 + $0x1c] sm:$0xf]
    %v443 = vld [vmem:[#allocation10 + $0x20] sm:$0xf]
    %v444 = vld [vmem:[#allocation10 + $0x24] sm:$0xf]
    %v445 = vld [vmem:[#allocation10 + $0x28] sm:$0xf]
    %v446 = vld [vmem:[#allocation10 + $0x2c] sm:$0xf]
    %v447 = vld [vmem:[#allocation10 + $0x30] sm:$0xf]
    %v448 = vld [vmem:[#allocation10 + $0x34] sm:$0xf]
    %v449 = vld [vmem:[#allocation10 + $0x38] sm:$0xf]
    %v450 = vld [vmem:[#allocation10 + $0x3c] sm:$0xf]
    %v467 = vunpack.c.l.b16 %v435
    %v468 = vunpack.c.l.b16 %v436
    %v469 = vunpack.c.l.b16 %v437
    %v470 = vunpack.c.l.b16 %v438
    %v471 = vunpack.c.l.b16 %v439
    %v472 = vunpack.c.l.b16 %v440
    %v473 = vunpack.c.l.b16 %v441
    %v474 = vunpack.c.l.b16 %v442
    %v475 = vunpack.c.l.b16 %v443
    %v476 = vunpack.c.l.b16 %v444
    %v477 = vunpack.c.l.b16 %v445
    %v478 = vunpack.c.l.b16 %v446
    %v479 = vunpack.c.l.b16 %v447
    %v480 = vunpack.c.l.b16 %v448
    %v481 = vunpack.c.l.b16 %v449
    %v482 = vunpack.c.l.b16 %v450
    %v483 = vpack.c.b16 %v468, %v467
    %v484 = vpack.c.b16 %v470, %v469
    %v485 = vpack.c.b16 %v472, %v471
    %v486 = vpack.c.b16 %v474, %v473
    %v487 = vpack.c.b16 %v476, %v475
    %v488 = vpack.c.b16 %v478, %v477
    %v489 = vpack.c.b16 %v480, %v479
    %v490 = vpack.c.b16 %v482, %v481
    %499 = vmatpush.bf16.msra.mxu0 %v490
    %500 = vmatpush.bf16.msra.mxu0 %v489
    %501 = vmatpush.bf16.msra.mxu0 %v488
    %502 = vmatpush.bf16.msra.mxu0 %v487
    %503 = vmatpush.bf16.msra.mxu0 %v486
    %504 = vmatpush.bf16.msra.mxu0 %v485
    %505 = vmatpush.bf16.msra.mxu0 %v484
    %506 = vmatpush.bf16.msra.mxu0 %v483
    %507 = vmatmul.bf16.gmra.mxu0 %v362
    %v508 = vpop.f32.mrf.mxu0
    %v509 = vadd.f32 0.0, %v508
    %v510 = vpop.f32.mrf.mxu0
    %v511 = vadd.f32 0.0, %v510
    %512 = vmatmul.bf16.gmra.mxu0 %v363
    %v513 = vpop.f32.mrf.mxu0
    %v514 = vadd.f32 0.0, %v513
    %v515 = vpop.f32.mrf.mxu0
    %v516 = vadd.f32 0.0, %v515
    %517 = vdwg.mxu0
    %v534 = vunpack.c.l.b16 %v419
    %v535 = vunpack.c.l.b16 %v420
    %v536 = vunpack.c.l.b16 %v421
    %v537 = vunpack.c.l.b16 %v422
    %v538 = vunpack.c.l.b16 %v423
    %v539 = vunpack.c.l.b16 %v424
    %v540 = vunpack.c.l.b16 %v425
    %v541 = vunpack.c.l.b16 %v426
    %v542 = vunpack.c.l.b16 %v427
    %v543 = vunpack.c.l.b16 %v428
    %v544 = vunpack.c.l.b16 %v429
    %v545 = vunpack.c.l.b16 %v430
    %v546 = vunpack.c.l.b16 %v431
    %v547 = vunpack.c.l.b16 %v432
    %v548 = vunpack.c.l.b16 %v433
    %v549 = vunpack.c.l.b16 %v434
    %v550 = vpack.c.b16 %v535, %v534
    %v551 = vpack.c.b16 %v537, %v536
    %v552 = vpack.c.b16 %v539, %v538
    %v553 = vpack.c.b16 %v541, %v540
    %v554 = vpack.c.b16 %v543, %v542
    %v555 = vpack.c.b16 %v545, %v544
    %v556 = vpack.c.b16 %v547, %v546
    %v557 = vpack.c.b16 %v549, %v548
    %566 = vmatpush.bf16.msra.mxu0 %v557
    %567 = vmatpush.bf16.msra.mxu0 %v556
    %568 = vmatpush.bf16.msra.mxu0 %v555
    %569 = vmatpush.bf16.msra.mxu0 %v554
    %570 = vmatpush.bf16.msra.mxu0 %v553
    %571 = vmatpush.bf16.msra.mxu0 %v552
    %572 = vmatpush.bf16.msra.mxu0 %v551
    %573 = vmatpush.bf16.msra.mxu0 %v550
    %574 = vmatmul.bf16.gmra.mxu0 %v390
    %v575 = vpop.f32.mrf.mxu0
    %v576 = vadd.f32 %v509, %v575
    %v577 = vpop.f32.mrf.mxu0
    %v578 = vadd.f32 %v511, %v577
    %579 = vmatmul.bf16.gmra.mxu0 %v391
    %v580 = vpop.f32.mrf.mxu0
    %v581 = vadd.f32 %v514, %v580
    %v582 = vpop.f32.mrf.mxu0
    %v583 = vadd.f32 %v516, %v582
    %584 = vdwg.mxu0
    %v585 = vld [vmem:[%s9] sm:$0x1]
    %v587 = vperm.slane %v585, 0
    %v589 = vadd.f32 %v576, %v587
    %v590 = vadd.f32 %v578, %v587
    %v591 = vadd.f32 %v581, %v587
    %v592 = vadd.f32 %v583, %v587
    %vm593 = vcmask 261120
    %v595 = vsel %vm593, %v264, 0
    %v598 = vsel %vm593, %v265, 0
    %600 = vmatpush.msra.mxu0 0.0
    %601 = vmatpush.msra.mxu0 0.0
    %602 = vmatpush.msra.mxu0 0.0
    %603 = vmatpush.msra.mxu0 0.0
    %604 = vmatpush.msra.mxu0 0.0
    %605 = vmatpush.msra.mxu0 0.0
    %606 = vmatpush.msra.mxu0 0.0
    %607 = vmatpush.msra.mxu0 0.0
    %608 = vmatpush.msra.mxu0 0.0
    %609 = vmatpush.msra.mxu0 0.0
    %610 = vmatpush.msra.mxu0 0.0
    %611 = vmatpush.msra.mxu0 0.0
    %612 = vmatpush.msra.mxu0 %v592
    %613 = vmatpush.msra.mxu0 %v591
    %614 = vmatpush.msra.mxu0 %v590
    %615 = vmatpush.msra.mxu0 %v589
    %616 = vmatmul.f32.gmra.mxu0 %v595
    %v617 = vpop.f32.mrf.mxu0
    %v618 = vadd.f32 0.0, %v617
    %619 = vmatmul.f32.gmra.mxu0 %v598
    %v620 = vpop.f32.mrf.mxu0
    %v621 = vadd.f32 0.0, %v620
    %622 = vdwg.mxu0
    %v623 = vld [vmem:[#allocation11] sm:$0xf]
    %v624 = vld [vmem:[#allocation11 + $0x4] sm:$0xf]
    %v625 = vld [vmem:[#allocation11 + $0x8] sm:$0xf]
    %v626 = vld [vmem:[#allocation11 + $0xc] sm:$0xf]
    %v627 = vld [vmem:[#allocation11 + $0x10] sm:$0xf]
    %v628 = vld [vmem:[#allocation11 + $0x14] sm:$0xf]
    %v629 = vld [vmem:[#allocation11 + $0x18] sm:$0xf]
    %v630 = vld [vmem:[#allocation11 + $0x1c] sm:$0xf]
    %v631 = vld [vmem:[#allocation11 + $0x20] sm:$0xf]
    %v632 = vld [vmem:[#allocation11 + $0x24] sm:$0xf]
    %v633 = vld [vmem:[#allocation11 + $0x28] sm:$0xf]
    %v634 = vld [vmem:[#allocation11 + $0x2c] sm:$0xf]
    %v635 = vld [vmem:[#allocation11 + $0x30] sm:$0xf]
    %v636 = vld [vmem:[#allocation11 + $0x34] sm:$0xf]
    %v637 = vld [vmem:[#allocation11 + $0x38] sm:$0xf]
    %v638 = vld [vmem:[#allocation11 + $0x3c] sm:$0xf]
    %v639 = vld [vmem:[%s11] sm:$0x1]
    %v641 = vperm.slane %v639, 0
    %v659 = vunpack.c.l.b16 %v623
    %v660 = vunpack.c.l.b16 %v624
    %v661 = vunpack.c.l.b16 %v625
    %v662 = vunpack.c.l.b16 %v626
    %v663 = vunpack.c.l.b16 %v627
    %v664 = vunpack.c.l.b16 %v628
    %v665 = vunpack.c.l.b16 %v629
    %v666 = vunpack.c.l.b16 %v630
    %v667 = vunpack.c.l.b16 %v631
    %v668 = vunpack.c.l.b16 %v632
    %v669 = vunpack.c.l.b16 %v633
    %v670 = vunpack.c.l.b16 %v634
    %v671 = vunpack.c.l.b16 %v635
    %v672 = vunpack.c.l.b16 %v636
    %v673 = vunpack.c.l.b16 %v637
    %v674 = vunpack.c.l.b16 %v638
    %v675 = vpack.c.b16 %v660, %v659
    %v676 = vpack.c.b16 %v662, %v661
    %v677 = vpack.c.b16 %v664, %v663
    %v678 = vpack.c.b16 %v666, %v665
    %v679 = vpack.c.b16 %v668, %v667
    %v680 = vpack.c.b16 %v670, %v669
    %v681 = vpack.c.b16 %v672, %v671
    %v682 = vpack.c.b16 %v674, %v673
    %691 = vmatpush.bf16.msra.mxu0 %v682
    %692 = vmatpush.bf16.msra.mxu0 %v681
    %693 = vmatpush.bf16.msra.mxu0 %v680
    %694 = vmatpush.bf16.msra.mxu0 %v679
    %695 = vmatpush.bf16.msra.mxu0 %v678
    %696 = vmatpush.bf16.msra.mxu0 %v677
    %697 = vmatpush.bf16.msra.mxu0 %v676
    %698 = vmatpush.bf16.msra.mxu0 %v675
    %699 = vmatmul.bf16.gmra.mxu0 %v361
    %v700 = vpop.f32.mrf.mxu0
    %v701 = vadd.f32 %v641, %v700
    %v702 = vpop.f32.mrf.mxu0
    %v703 = vadd.f32 %v641, %v702
    %704 = vdwg.mxu0
    %v705 = vadd.f32 %v701, %v618
    %v706 = vadd.f32 %v703, %v621
    %v707 = vld [vmem:[#allocation13] sm:$0xf]
    %v708 = vld [vmem:[#allocation13 + $0x4] sm:$0xf]
    %v709 = vld [vmem:[#allocation13 + $0x8] sm:$0xf]
    %v710 = vld [vmem:[#allocation13 + $0xc] sm:$0xf]
    %v711 = vld [vmem:[#allocation13 + $0x10] sm:$0xf]
    %v712 = vld [vmem:[#allocation13 + $0x14] sm:$0xf]
    %v713 = vld [vmem:[#allocation13 + $0x18] sm:$0xf]
    %v714 = vld [vmem:[#allocation13 + $0x1c] sm:$0xf]
    %v715 = vld [vmem:[#allocation13 + $0x20] sm:$0xf]
    %v716 = vld [vmem:[#allocation13 + $0x24] sm:$0xf]
    %v717 = vld [vmem:[#allocation13 + $0x28] sm:$0xf]
    %v718 = vld [vmem:[#allocation13 + $0x2c] sm:$0xf]
    %v719 = vld [vmem:[#allocation13 + $0x30] sm:$0xf]
    %v720 = vld [vmem:[#allocation13 + $0x34] sm:$0xf]
    %v721 = vld [vmem:[#allocation13 + $0x38] sm:$0xf]
    %v722 = vld [vmem:[#allocation13 + $0x3c] sm:$0xf]
    %v723 = vld [vmem:[#allocation14] sm:$0xf]
    %v724 = vld [vmem:[#allocation14 + $0x4] sm:$0xf]
    %v725 = vld [vmem:[#allocation14 + $0x8] sm:$0xf]
    %v726 = vld [vmem:[#allocation14 + $0xc] sm:$0xf]
    %v727 = vld [vmem:[#allocation14 + $0x10] sm:$0xf]
    %v728 = vld [vmem:[#allocation14 + $0x14] sm:$0xf]
    %v729 = vld [vmem:[#allocation14 + $0x18] sm:$0xf]
    %v730 = vld [vmem:[#allocation14 + $0x1c] sm:$0xf]
    %v731 = vld [vmem:[#allocation14 + $0x20] sm:$0xf]
    %v732 = vld [vmem:[#allocation14 + $0x24] sm:$0xf]
    %v733 = vld [vmem:[#allocation14 + $0x28] sm:$0xf]
    %v734 = vld [vmem:[#allocation14 + $0x2c] sm:$0xf]
    %v735 = vld [vmem:[#allocation14 + $0x30] sm:$0xf]
    %v736 = vld [vmem:[#allocation14 + $0x34] sm:$0xf]
    %v737 = vld [vmem:[#allocation14 + $0x38] sm:$0xf]
    %v738 = vld [vmem:[#allocation14 + $0x3c] sm:$0xf]
    %v755 = vunpack.c.l.b16 %v723
    %v756 = vunpack.c.l.b16 %v724
    %v757 = vunpack.c.l.b16 %v725
    %v758 = vunpack.c.l.b16 %v726
    %v759 = vunpack.c.l.b16 %v727
    %v760 = vunpack.c.l.b16 %v728
    %v761 = vunpack.c.l.b16 %v729
    %v762 = vunpack.c.l.b16 %v730
    %v763 = vunpack.c.l.b16 %v731
    %v764 = vunpack.c.l.b16 %v732
    %v765 = vunpack.c.l.b16 %v733
    %v766 = vunpack.c.l.b16 %v734
    %v767 = vunpack.c.l.b16 %v735
    %v768 = vunpack.c.l.b16 %v736
    %v769 = vunpack.c.l.b16 %v737
    %v770 = vunpack.c.l.b16 %v738
    %v771 = vpack.c.b16 %v756, %v755
    %v772 = vpack.c.b16 %v758, %v757
    %v773 = vpack.c.b16 %v760, %v759
    %v774 = vpack.c.b16 %v762, %v761
    %v775 = vpack.c.b16 %v764, %v763
    %v776 = vpack.c.b16 %v766, %v765
    %v777 = vpack.c.b16 %v768, %v767
    %v778 = vpack.c.b16 %v770, %v769
    %787 = vmatpush.bf16.msra.mxu0 %v778
    %788 = vmatpush.bf16.msra.mxu0 %v777
    %789 = vmatpush.bf16.msra.mxu0 %v776
    %790 = vmatpush.bf16.msra.mxu0 %v775
    %791 = vmatpush.bf16.msra.mxu0 %v774
    %792 = vmatpush.bf16.msra.mxu0 %v773
    %793 = vmatpush.bf16.msra.mxu0 %v772
    %794 = vmatpush.bf16.msra.mxu0 %v771
    %795 = vmatmul.bf16.gmra.mxu0 %v417
    %v796 = vpop.f32.mrf.mxu0
    %v797 = vadd.f32 0.0, %v796
    %v798 = vpop.f32.mrf.mxu0
    %v799 = vadd.f32 0.0, %v798
    %800 = vmatmul.bf16.gmra.mxu0 %v418
    %v801 = vpop.f32.mrf.mxu0
    %v802 = vadd.f32 0.0, %v801
    %v803 = vpop.f32.mrf.mxu0
    %v804 = vadd.f32 0.0, %v803
    %805 = vdwg.mxu0
    %v822 = vunpack.c.l.b16 %v707
    %v823 = vunpack.c.l.b16 %v708
    %v824 = vunpack.c.l.b16 %v709
    %v825 = vunpack.c.l.b16 %v710
    %v826 = vunpack.c.l.b16 %v711
    %v827 = vunpack.c.l.b16 %v712
    %v828 = vunpack.c.l.b16 %v713
    %v829 = vunpack.c.l.b16 %v714
    %v830 = vunpack.c.l.b16 %v715
    %v831 = vunpack.c.l.b16 %v716
    %v832 = vunpack.c.l.b16 %v717
    %v833 = vunpack.c.l.b16 %v718
    %v834 = vunpack.c.l.b16 %v719
    %v835 = vunpack.c.l.b16 %v720
    %v836 = vunpack.c.l.b16 %v721
    %v837 = vunpack.c.l.b16 %v722
    %v838 = vpack.c.b16 %v823, %v822
    %v839 = vpack.c.b16 %v825, %v824
    %v840 = vpack.c.b16 %v827, %v826
    %v841 = vpack.c.b16 %v829, %v828
    %v842 = vpack.c.b16 %v831, %v830
    %v843 = vpack.c.b16 %v833, %v832
    %v844 = vpack.c.b16 %v835, %v834
    %v845 = vpack.c.b16 %v837, %v836
    %854 = vmatpush.bf16.msra.mxu0 %v845
    %855 = vmatpush.bf16.msra.mxu0 %v844
    %856 = vmatpush.bf16.msra.mxu0 %v843
    %857 = vmatpush.bf16.msra.mxu0 %v842
    %858 = vmatpush.bf16.msra.mxu0 %v841
    %859 = vmatpush.bf16.msra.mxu0 %v840
    %860 = vmatpush.bf16.msra.mxu0 %v839
    %861 = vmatpush.bf16.msra.mxu0 %v838
    %862 = vmatmul.bf16.gmra.mxu0 %v390
    %v863 = vpop.f32.mrf.mxu0
    %v864 = vadd.f32 %v797, %v863
    %v865 = vpop.f32.mrf.mxu0
    %v866 = vadd.f32 %v799, %v865
    %867 = vmatmul.bf16.gmra.mxu0 %v391
    %v868 = vpop.f32.mrf.mxu0
    %v869 = vadd.f32 %v802, %v868
    %v870 = vpop.f32.mrf.mxu0
    %v871 = vadd.f32 %v804, %v870
    %872 = vdwg.mxu0
    %v873 = vld [vmem:[#allocation16] sm:$0xf]
    %v874 = vld [vmem:[#allocation16 + $0x4] sm:$0xf]
    %v875 = vld [vmem:[#allocation16 + $0x8] sm:$0xf]
    %v876 = vld [vmem:[#allocation16 + $0xc] sm:$0xf]
    %v877 = vld [vmem:[#allocation16 + $0x10] sm:$0xf]
    %v878 = vld [vmem:[#allocation16 + $0x14] sm:$0xf]
    %v879 = vld [vmem:[#allocation16 + $0x18] sm:$0xf]
    %v880 = vld [vmem:[#allocation16 + $0x1c] sm:$0xf]
    %v881 = vld [vmem:[#allocation16 + $0x20] sm:$0xf]
    %v882 = vld [vmem:[#allocation16 + $0x24] sm:$0xf]
    %v883 = vld [vmem:[#allocation16 + $0x28] sm:$0xf]
    %v884 = vld [vmem:[#allocation16 + $0x2c] sm:$0xf]
    %v885 = vld [vmem:[#allocation16 + $0x30] sm:$0xf]
    %v886 = vld [vmem:[#allocation16 + $0x34] sm:$0xf]
    %v887 = vld [vmem:[#allocation16 + $0x38] sm:$0xf]
    %v888 = vld [vmem:[#allocation16 + $0x3c] sm:$0xf]
    %v905 = vunpack.c.l.b16 %v873
    %v906 = vunpack.c.l.b16 %v874
    %v907 = vunpack.c.l.b16 %v875
    %v908 = vunpack.c.l.b16 %v876
    %v909 = vunpack.c.l.b16 %v877
    %v910 = vunpack.c.l.b16 %v878
    %v911 = vunpack.c.l.b16 %v879
    %v912 = vunpack.c.l.b16 %v880
    %v913 = vunpack.c.l.b16 %v881
    %v914 = vunpack.c.l.b16 %v882
    %v915 = vunpack.c.l.b16 %v883
    %v916 = vunpack.c.l.b16 %v884
    %v917 = vunpack.c.l.b16 %v885
    %v918 = vunpack.c.l.b16 %v886
    %v919 = vunpack.c.l.b16 %v887
    %v920 = vunpack.c.l.b16 %v888
    %v921 = vpack.c.b16 %v906, %v905
    %v922 = vpack.c.b16 %v908, %v907
    %v923 = vpack.c.b16 %v910, %v909
    %v924 = vpack.c.b16 %v912, %v911
    %v925 = vpack.c.b16 %v914, %v913
    %v926 = vpack.c.b16 %v916, %v915
    %v927 = vpack.c.b16 %v918, %v917
    %v928 = vpack.c.b16 %v920, %v919
    %937 = vmatpush.bf16.msra.mxu0 %v928
    %938 = vmatpush.bf16.msra.mxu0 %v927
    %939 = vmatpush.bf16.msra.mxu0 %v926
    %940 = vmatpush.bf16.msra.mxu0 %v925
    %941 = vmatpush.bf16.msra.mxu0 %v924
    %942 = vmatpush.bf16.msra.mxu0 %v923
    %943 = vmatpush.bf16.msra.mxu0 %v922
    %944 = vmatpush.bf16.msra.mxu0 %v921
    %945 = vmatmul.bf16.gmra.mxu0 %v362
    %v946 = vpop.f32.mrf.mxu0
    %v947 = vadd.f32 0.0, %v946
    %v948 = vpop.f32.mrf.mxu0
    %v949 = vadd.f32 0.0, %v948
    %950 = vmatmul.bf16.gmra.mxu0 %v363
    %v951 = vpop.f32.mrf.mxu0
    %v952 = vadd.f32 0.0, %v951
    %v953 = vpop.f32.mrf.mxu0
    %v954 = vadd.f32 0.0, %v953
    %955 = vdwg.mxu0
    %v956 = vadd.f32 %v864, %v947
    %v957 = vadd.f32 %v866, %v949
    %v958 = vadd.f32 %v869, %v952
    %v959 = vadd.f32 %v871, %v954
    %v960 = vld [vmem:[%s15] sm:$0x1]
    %v962 = vperm.slane %v960, 0
    %v964 = vadd.f32 %v956, %v962
    %v965 = vadd.f32 %v957, %v962
    %v966 = vadd.f32 %v958, %v962
    %v967 = vadd.f32 %v959, %v962
    %v968 = vmax.f32 %v705, 0.0
    %v969 = vmax.f32 %v706, 0.0
    %v970 = vmax.f32 %v964, 0.0
    %v971 = vmax.f32 %v965, 0.0
    %v972 = vmax.f32 %v966, 0.0
    %v973 = vmax.f32 %v967, 0.0
    %v974 = vpack.c.bf16 %v969, %v968
    %v975 = vpack.c.bf16 %v971, %v970
    %v976 = vpack.c.bf16 %v973, %v972
    %977 = vmatpush.bf16.msra.mxu0 0
    %978 = vmatpush.bf16.msra.mxu0 0
    %979 = vmatpush.bf16.msra.mxu0 0
    %980 = vmatpush.bf16.msra.mxu0 0
    %981 = vmatpush.bf16.msra.mxu0 0
    %982 = vmatpush.bf16.msra.mxu0 0
    %983 = vmatpush.bf16.msra.mxu0 0
    %984 = vmatpush.bf16.msra.mxu0 %v974
    %985 = vmatmul.bf16.gmra.mxu0 %v366
    %v986 = vpop.f32.mrf.mxu0
    %v987 = vadd.f32 0.0, %v986
    %v988 = vpop.f32.mrf.mxu0
    %v989 = vadd.f32 0.0, %v988
    %990 = vmatmul.bf16.gmra.mxu0 %v369
    %v991 = vpop.f32.mrf.mxu0
    %v992 = vadd.f32 0.0, %v991
    %v993 = vpop.f32.mrf.mxu0
    %v994 = vadd.f32 0.0, %v993
    %995 = vdwg.mxu0
    %v996 = vpack.c.bf16 %v989, %v987
    %v997 = vpack.c.bf16 %v994, %v992
    %998 = vmatpush.bf16.msra.mxu0 0
    %999 = vmatpush.bf16.msra.mxu0 0
    %1000 = vmatpush.bf16.msra.mxu0 0
    %1001 = vmatpush.bf16.msra.mxu0 0
    %1002 = vmatpush.bf16.msra.mxu0 0
    %1003 = vmatpush.bf16.msra.mxu0 0
    %1004 = vmatpush.bf16.msra.mxu0 0
    %1005 = vmatpush.bf16.msra.mxu0 %v974
    %1006 = vmatmul.bf16.gmra.mxu0 %v393
    %v1007 = vpop.f32.mrf.mxu0
    %v1008 = vadd.f32 0.0, %v1007
    %v1009 = vpop.f32.mrf.mxu0
    %v1010 = vadd.f32 0.0, %v1009
    %1011 = vmatmul.bf16.gmra.mxu0 %v396
    %v1012 = vpop.f32.mrf.mxu0
    %v1013 = vadd.f32 0.0, %v1012
    %v1014 = vpop.f32.mrf.mxu0
    %v1015 = vadd.f32 0.0, %v1014
    %1016 = vdwg.mxu0
    %v1017 = vpack.c.bf16 %v1010, %v1008
    %v1018 = vpack.c.bf16 %v1015, %v1013
    %s1019 = scalar_lea.vmem [#allocation8], 64
    %v1020 = vld [vmem:[%s1019] sm:$0xf]
    %v1021 = vld [vmem:[%s1019 + $0x4] sm:$0xf]
    %v1022 = vld [vmem:[%s1019 + $0x8] sm:$0xf]
    %v1023 = vld [vmem:[%s1019 + $0xc] sm:$0xf]
    %v1024 = vld [vmem:[%s1019 + $0x10] sm:$0xf]
    %v1025 = vld [vmem:[%s1019 + $0x14] sm:$0xf]
    %v1026 = vld [vmem:[%s1019 + $0x18] sm:$0xf]
    %v1027 = vld [vmem:[%s1019 + $0x1c] sm:$0xf]
    %v1028 = vld [vmem:[%s1019 + $0x20] sm:$0xf]
    %v1029 = vld [vmem:[%s1019 + $0x24] sm:$0xf]
    %v1030 = vld [vmem:[%s1019 + $0x28] sm:$0xf]
    %v1031 = vld [vmem:[%s1019 + $0x2c] sm:$0xf]
    %v1032 = vld [vmem:[%s1019 + $0x30] sm:$0xf]
    %v1033 = vld [vmem:[%s1019 + $0x34] sm:$0xf]
    %v1034 = vld [vmem:[%s1019 + $0x38] sm:$0xf]
    %v1035 = vld [vmem:[%s1019 + $0x3c] sm:$0xf]
    %s1036 = scalar_lea.vmem [#allocation10], 64
    %v1037 = vld [vmem:[%s1036] sm:$0xf]
    %v1038 = vld [vmem:[%s1036 + $0x4] sm:$0xf]
    %v1039 = vld [vmem:[%s1036 + $0x8] sm:$0xf]
    %v1040 = vld [vmem:[%s1036 + $0xc] sm:$0xf]
    %v1041 = vld [vmem:[%s1036 + $0x10] sm:$0xf]
    %v1042 = vld [vmem:[%s1036 + $0x14] sm:$0xf]
    %v1043 = vld [vmem:[%s1036 + $0x18] sm:$0xf]
    %v1044 = vld [vmem:[%s1036 + $0x1c] sm:$0xf]
    %v1045 = vld [vmem:[%s1036 + $0x20] sm:$0xf]
    %v1046 = vld [vmem:[%s1036 + $0x24] sm:$0xf]
    %v1047 = vld [vmem:[%s1036 + $0x28] sm:$0xf]
    %v1048 = vld [vmem:[%s1036 + $0x2c] sm:$0xf]
    %v1049 = vld [vmem:[%s1036 + $0x30] sm:$0xf]
    %v1050 = vld [vmem:[%s1036 + $0x34] sm:$0xf]
    %v1051 = vld [vmem:[%s1036 + $0x38] sm:$0xf]
    %v1052 = vld [vmem:[%s1036 + $0x3c] sm:$0xf]
    %v1069 = vunpack.c.l.b16 %v1037
    %v1070 = vunpack.c.l.b16 %v1038
    %v1071 = vunpack.c.l.b16 %v1039
    %v1072 = vunpack.c.l.b16 %v1040
    %v1073 = vunpack.c.l.b16 %v1041
    %v1074 = vunpack.c.l.b16 %v1042
    %v1075 = vunpack.c.l.b16 %v1043
    %v1076 = vunpack.c.l.b16 %v1044
    %v1077 = vunpack.c.l.b16 %v1045
    %v1078 = vunpack.c.l.b16 %v1046
    %v1079 = vunpack.c.l.b16 %v1047
    %v1080 = vunpack.c.l.b16 %v1048
    %v1081 = vunpack.c.l.b16 %v1049
    %v1082 = vunpack.c.l.b16 %v1050
    %v1083 = vunpack.c.l.b16 %v1051
    %v1084 = vunpack.c.l.b16 %v1052
    %v1085 = vpack.c.b16 %v1070, %v1069
    %v1086 = vpack.c.b16 %v1072, %v1071
    %v1087 = vpack.c.b16 %v1074, %v1073
    %v1088 = vpack.c.b16 %v1076, %v1075
    %v1089 = vpack.c.b16 %v1078, %v1077
    %v1090 = vpack.c.b16 %v1080, %v1079
    %v1091 = vpack.c.b16 %v1082, %v1081
    %v1092 = vpack.c.b16 %v1084, %v1083
    %1101 = vmatpush.bf16.msra.mxu0 %v1092
    %1102 = vmatpush.bf16.msra.mxu0 %v1091
    %1103 = vmatpush.bf16.msra.mxu0 %v1090
    %1104 = vmatpush.bf16.msra.mxu0 %v1089
    %1105 = vmatpush.bf16.msra.mxu0 %v1088
    %1106 = vmatpush.bf16.msra.mxu0 %v1087
    %1107 = vmatpush.bf16.msra.mxu0 %v1086
    %1108 = vmatpush.bf16.msra.mxu0 %v1085
    %1109 = vmatmul.bf16.gmra.mxu0 %v975
    %v1110 = vpop.f32.mrf.mxu0
    %v1111 = vadd.f32 0.0, %v1110
    %v1112 = vpop.f32.mrf.mxu0
    %v1113 = vadd.f32 0.0, %v1112
    %1114 = vmatmul.bf16.gmra.mxu0 %v976
    %v1115 = vpop.f32.mrf.mxu0
    %v1116 = vadd.f32 0.0, %v1115
    %v1117 = vpop.f32.mrf.mxu0
    %v1118 = vadd.f32 0.0, %v1117
    %1119 = vdwg.mxu0
    %v1136 = vunpack.c.l.b16 %v1020
    %v1137 = vunpack.c.l.b16 %v1021
    %v1138 = vunpack.c.l.b16 %v1022
    %v1139 = vunpack.c.l.b16 %v1023
    %v1140 = vunpack.c.l.b16 %v1024
    %v1141 = vunpack.c.l.b16 %v1025
    %v1142 = vunpack.c.l.b16 %v1026
    %v1143 = vunpack.c.l.b16 %v1027
    %v1144 = vunpack.c.l.b16 %v1028
    %v1145 = vunpack.c.l.b16 %v1029
    %v1146 = vunpack.c.l.b16 %v1030
    %v1147 = vunpack.c.l.b16 %v1031
    %v1148 = vunpack.c.l.b16 %v1032
    %v1149 = vunpack.c.l.b16 %v1033
    %v1150 = vunpack.c.l.b16 %v1034
    %v1151 = vunpack.c.l.b16 %v1035
    %v1152 = vpack.c.b16 %v1137, %v1136
    %v1153 = vpack.c.b16 %v1139, %v1138
    %v1154 = vpack.c.b16 %v1141, %v1140
    %v1155 = vpack.c.b16 %v1143, %v1142
    %v1156 = vpack.c.b16 %v1145, %v1144
    %v1157 = vpack.c.b16 %v1147, %v1146
    %v1158 = vpack.c.b16 %v1149, %v1148
    %v1159 = vpack.c.b16 %v1151, %v1150
    %1168 = vmatpush.bf16.msra.mxu0 %v1159
    %1169 = vmatpush.bf16.msra.mxu0 %v1158
    %1170 = vmatpush.bf16.msra.mxu0 %v1157
    %1171 = vmatpush.bf16.msra.mxu0 %v1156
    %1172 = vmatpush.bf16.msra.mxu0 %v1155
    %1173 = vmatpush.bf16.msra.mxu0 %v1154
    %1174 = vmatpush.bf16.msra.mxu0 %v1153
    %1175 = vmatpush.bf16.msra.mxu0 %v1152
    %1176 = vmatmul.bf16.gmra.mxu0 %v996
    %v1177 = vpop.f32.mrf.mxu0
    %v1178 = vadd.f32 %v1111, %v1177
    %v1179 = vpop.f32.mrf.mxu0
    %v1180 = vadd.f32 %v1113, %v1179
    %1181 = vmatmul.bf16.gmra.mxu0 %v997
    %v1182 = vpop.f32.mrf.mxu0
    %v1183 = vadd.f32 %v1116, %v1182
    %v1184 = vpop.f32.mrf.mxu0
    %v1185 = vadd.f32 %v1118, %v1184
    %1186 = vdwg.mxu0
    %s1187 = scalar_lea.vmem %s9, 1
    %v1188 = vld [vmem:[%s1187] sm:$0x1]
    %v1190 = vperm.slane %v1188, 0
    %v1192 = vadd.f32 %v1178, %v1190
    %v1193 = vadd.f32 %v1180, %v1190
    %v1194 = vadd.f32 %v1183, %v1190
    %v1195 = vadd.f32 %v1185, %v1190
    %1196 = vmatpush.msra.mxu0 0.0
    %1197 = vmatpush.msra.mxu0 0.0
    %1198 = vmatpush.msra.mxu0 0.0
    %1199 = vmatpush.msra.mxu0 0.0
    %1200 = vmatpush.msra.mxu0 0.0
    %1201 = vmatpush.msra.mxu0 0.0
    %1202 = vmatpush.msra.mxu0 0.0
    %1203 = vmatpush.msra.mxu0 0.0
    %1204 = vmatpush.msra.mxu0 0.0
    %1205 = vmatpush.msra.mxu0 0.0
    %1206 = vmatpush.msra.mxu0 0.0
    %1207 = vmatpush.msra.mxu0 0.0
    %1208 = vmatpush.msra.mxu0 %v1195
    %1209 = vmatpush.msra.mxu0 %v1194
    %1210 = vmatpush.msra.mxu0 %v1193
    %1211 = vmatpush.msra.mxu0 %v1192
    %1212 = vmatmul.f32.gmra.mxu0 %v595
    %v1213 = vpop.f32.mrf.mxu0
    %v1214 = vadd.f32 0.0, %v1213
    %1215 = vmatmul.f32.gmra.mxu0 %v598
    %v1216 = vpop.f32.mrf.mxu0
    %v1217 = vadd.f32 0.0, %v1216
    %1218 = vdwg.mxu0
    %s1219 = scalar_lea.vmem [#allocation11], 64
    %v1220 = vld [vmem:[%s1219] sm:$0xf]
    %v1221 = vld [vmem:[%s1219 + $0x4] sm:$0xf]
    %v1222 = vld [vmem:[%s1219 + $0x8] sm:$0xf]
    %v1223 = vld [vmem:[%s1219 + $0xc] sm:$0xf]
    %v1224 = vld [vmem:[%s1219 + $0x10] sm:$0xf]
    %v1225 = vld [vmem:[%s1219 + $0x14] sm:$0xf]
    %v1226 = vld [vmem:[%s1219 + $0x18] sm:$0xf]
    %v1227 = vld [vmem:[%s1219 + $0x1c] sm:$0xf]
    %v1228 = vld [vmem:[%s1219 + $0x20] sm:$0xf]
    %v1229 = vld [vmem:[%s1219 + $0x24] sm:$0xf]
    %v1230 = vld [vmem:[%s1219 + $0x28] sm:$0xf]
    %v1231 = vld [vmem:[%s1219 + $0x2c] sm:$0xf]
    %v1232 = vld [vmem:[%s1219 + $0x30] sm:$0xf]
    %v1233 = vld [vmem:[%s1219 + $0x34] sm:$0xf]
    %v1234 = vld [vmem:[%s1219 + $0x38] sm:$0xf]
    %v1235 = vld [vmem:[%s1219 + $0x3c] sm:$0xf]
    %s1236 = scalar_lea.vmem %s11, 1
    %v1237 = vld [vmem:[%s1236] sm:$0x1]
    %v1239 = vperm.slane %v1237, 0
    %v1257 = vunpack.c.l.b16 %v1220
    %v1258 = vunpack.c.l.b16 %v1221
    %v1259 = vunpack.c.l.b16 %v1222
    %v1260 = vunpack.c.l.b16 %v1223
    %v1261 = vunpack.c.l.b16 %v1224
    %v1262 = vunpack.c.l.b16 %v1225
    %v1263 = vunpack.c.l.b16 %v1226
    %v1264 = vunpack.c.l.b16 %v1227
    %v1265 = vunpack.c.l.b16 %v1228
    %v1266 = vunpack.c.l.b16 %v1229
    %v1267 = vunpack.c.l.b16 %v1230
    %v1268 = vunpack.c.l.b16 %v1231
    %v1269 = vunpack.c.l.b16 %v1232
    %v1270 = vunpack.c.l.b16 %v1233
    %v1271 = vunpack.c.l.b16 %v1234
    %v1272 = vunpack.c.l.b16 %v1235
    %v1273 = vpack.c.b16 %v1258, %v1257
    %v1274 = vpack.c.b16 %v1260, %v1259
    %v1275 = vpack.c.b16 %v1262, %v1261
    %v1276 = vpack.c.b16 %v1264, %v1263
    %v1277 = vpack.c.b16 %v1266, %v1265
    %v1278 = vpack.c.b16 %v1268, %v1267
    %v1279 = vpack.c.b16 %v1270, %v1269
    %v1280 = vpack.c.b16 %v1272, %v1271
    %1289 = vmatpush.bf16.msra.mxu0 %v1280
    %1290 = vmatpush.bf16.msra.mxu0 %v1279
    %1291 = vmatpush.bf16.msra.mxu0 %v1278
    %1292 = vmatpush.bf16.msra.mxu0 %v1277
    %1293 = vmatpush.bf16.msra.mxu0 %v1276
    %1294 = vmatpush.bf16.msra.mxu0 %v1275
    %1295 = vmatpush.bf16.msra.mxu0 %v1274
    %1296 = vmatpush.bf16.msra.mxu0 %v1273
    %1297 = vmatmul.bf16.gmra.mxu0 %v974
    %v1298 = vpop.f32.mrf.mxu0
    %v1299 = vadd.f32 %v1239, %v1298
    %v1300 = vpop.f32.mrf.mxu0
    %v1301 = vadd.f32 %v1239, %v1300
    %1302 = vdwg.mxu0
    %v1303 = vadd.f32 %v1299, %v1214
    %v1304 = vadd.f32 %v1301, %v1217
    %s1305 = scalar_lea.vmem [#allocation13], 64
    %v1306 = vld [vmem:[%s1305] sm:$0xf]
    %v1307 = vld [vmem:[%s1305 + $0x4] sm:$0xf]
    %v1308 = vld [vmem:[%s1305 + $0x8] sm:$0xf]
    %v1309 = vld [vmem:[%s1305 + $0xc] sm:$0xf]
    %v1310 = vld [vmem:[%s1305 + $0x10] sm:$0xf]
    %v1311 = vld [vmem:[%s1305 + $0x14] sm:$0xf]
    %v1312 = vld [vmem:[%s1305 + $0x18] sm:$0xf]
    %v1313 = vld [vmem:[%s1305 + $0x1c] sm:$0xf]
    %v1314 = vld [vmem:[%s1305 + $0x20] sm:$0xf]
    %v1315 = vld [vmem:[%s1305 + $0x24] sm:$0xf]
    %v1316 = vld [vmem:[%s1305 + $0x28] sm:$0xf]
    %v1317 = vld [vmem:[%s1305 + $0x2c] sm:$0xf]
    %v1318 = vld [vmem:[%s1305 + $0x30] sm:$0xf]
    %v1319 = vld [vmem:[%s1305 + $0x34] sm:$0xf]
    %v1320 = vld [vmem:[%s1305 + $0x38] sm:$0xf]
    %v1321 = vld [vmem:[%s1305 + $0x3c] sm:$0xf]
    %s1322 = scalar_lea.vmem [#allocation14], 64
    %v1323 = vld [vmem:[%s1322] sm:$0xf]
    %v1324 = vld [vmem:[%s1322 + $0x4] sm:$0xf]
    %v1325 = vld [vmem:[%s1322 + $0x8] sm:$0xf]
    %v1326 = vld [vmem:[%s1322 + $0xc] sm:$0xf]
    %v1327 = vld [vmem:[%s1322 + $0x10] sm:$0xf]
    %v1328 = vld [vmem:[%s1322 + $0x14] sm:$0xf]
    %v1329 = vld [vmem:[%s1322 + $0x18] sm:$0xf]
    %v1330 = vld [vmem:[%s1322 + $0x1c] sm:$0xf]
    %v1331 = vld [vmem:[%s1322 + $0x20] sm:$0xf]
    %v1332 = vld [vmem:[%s1322 + $0x24] sm:$0xf]
    %v1333 = vld [vmem:[%s1322 + $0x28] sm:$0xf]
    %v1334 = vld [vmem:[%s1322 + $0x2c] sm:$0xf]
    %v1335 = vld [vmem:[%s1322 + $0x30] sm:$0xf]
    %v1336 = vld [vmem:[%s1322 + $0x34] sm:$0xf]
    %v1337 = vld [vmem:[%s1322 + $0x38] sm:$0xf]
    %v1338 = vld [vmem:[%s1322 + $0x3c] sm:$0xf]
    %v1355 = vunpack.c.l.b16 %v1323
    %v1356 = vunpack.c.l.b16 %v1324
    %v1357 = vunpack.c.l.b16 %v1325
    %v1358 = vunpack.c.l.b16 %v1326
    %v1359 = vunpack.c.l.b16 %v1327
    %v1360 = vunpack.c.l.b16 %v1328
    %v1361 = vunpack.c.l.b16 %v1329
    %v1362 = vunpack.c.l.b16 %v1330
    %v1363 = vunpack.c.l.b16 %v1331
    %v1364 = vunpack.c.l.b16 %v1332
    %v1365 = vunpack.c.l.b16 %v1333
    %v1366 = vunpack.c.l.b16 %v1334
    %v1367 = vunpack.c.l.b16 %v1335
    %v1368 = vunpack.c.l.b16 %v1336
    %v1369 = vunpack.c.l.b16 %v1337
    %v1370 = vunpack.c.l.b16 %v1338
    %v1371 = vpack.c.b16 %v1356, %v1355
    %v1372 = vpack.c.b16 %v1358, %v1357
    %v1373 = vpack.c.b16 %v1360, %v1359
    %v1374 = vpack.c.b16 %v1362, %v1361
    %v1375 = vpack.c.b16 %v1364, %v1363
    %v1376 = vpack.c.b16 %v1366, %v1365
    %v1377 = vpack.c.b16 %v1368, %v1367
    %v1378 = vpack.c.b16 %v1370, %v1369
    %1387 = vmatpush.bf16.msra.mxu0 %v1378
    %1388 = vmatpush.bf16.msra.mxu0 %v1377
    %1389 = vmatpush.bf16.msra.mxu0 %v1376
    %1390 = vmatpush.bf16.msra.mxu0 %v1375
    %1391 = vmatpush.bf16.msra.mxu0 %v1374
    %1392 = vmatpush.bf16.msra.mxu0 %v1373
    %1393 = vmatpush.bf16.msra.mxu0 %v1372
    %1394 = vmatpush.bf16.msra.mxu0 %v1371
    %1395 = vmatmul.bf16.gmra.mxu0 %v1017
    %v1396 = vpop.f32.mrf.mxu0
    %v1397 = vadd.f32 0.0, %v1396
    %v1398 = vpop.f32.mrf.mxu0
    %v1399 = vadd.f32 0.0, %v1398
    %1400 = vmatmul.bf16.gmra.mxu0 %v1018
    %v1401 = vpop.f32.mrf.mxu0
    %v1402 = vadd.f32 0.0, %v1401
    %v1403 = vpop.f32.mrf.mxu0
    %v1404 = vadd.f32 0.0, %v1403
    %1405 = vdwg.mxu0
    %v1422 = vunpack.c.l.b16 %v1306
    %v1423 = vunpack.c.l.b16 %v1307
    %v1424 = vunpack.c.l.b16 %v1308
    %v1425 = vunpack.c.l.b16 %v1309
    %v1426 = vunpack.c.l.b16 %v1310
    %v1427 = vunpack.c.l.b16 %v1311
    %v1428 = vunpack.c.l.b16 %v1312
    %v1429 = vunpack.c.l.b16 %v1313
    %v1430 = vunpack.c.l.b16 %v1314
    %v1431 = vunpack.c.l.b16 %v1315
    %v1432 = vunpack.c.l.b16 %v1316
    %v1433 = vunpack.c.l.b16 %v1317
    %v1434 = vunpack.c.l.b16 %v1318
    %v1435 = vunpack.c.l.b16 %v1319
    %v1436 = vunpack.c.l.b16 %v1320
    %v1437 = vunpack.c.l.b16 %v1321
    %v1438 = vpack.c.b16 %v1423, %v1422
    %v1439 = vpack.c.b16 %v1425, %v1424
    %v1440 = vpack.c.b16 %v1427, %v1426
    %v1441 = vpack.c.b16 %v1429, %v1428
    %v1442 = vpack.c.b16 %v1431, %v1430
    %v1443 = vpack.c.b16 %v1433, %v1432
    %v1444 = vpack.c.b16 %v1435, %v1434
    %v1445 = vpack.c.b16 %v1437, %v1436
    %1454 = vmatpush.bf16.msra.mxu0 %v1445
    %1455 = vmatpush.bf16.msra.mxu0 %v1444
    %1456 = vmatpush.bf16.msra.mxu0 %v1443
    %1457 = vmatpush.bf16.msra.mxu0 %v1442
    %1458 = vmatpush.bf16.msra.mxu0 %v1441
    %1459 = vmatpush.bf16.msra.mxu0 %v1440
    %1460 = vmatpush.bf16.msra.mxu0 %v1439
    %1461 = vmatpush.bf16.msra.mxu0 %v1438
    %1462 = vmatmul.bf16.gmra.mxu0 %v996
    %v1463 = vpop.f32.mrf.mxu0
    %v1464 = vadd.f32 %v1397, %v1463
    %v1465 = vpop.f32.mrf.mxu0
    %v1466 = vadd.f32 %v1399, %v1465
    %1467 = vmatmul.bf16.gmra.mxu0 %v997
    %v1468 = vpop.f32.mrf.mxu0
    %v1469 = vadd.f32 %v1402, %v1468
    %v1470 = vpop.f32.mrf.mxu0
    %v1471 = vadd.f32 %v1404, %v1470
    %1472 = vdwg.mxu0
    %s1473 = scalar_lea.vmem [#allocation16], 64
    %v1474 = vld [vmem:[%s1473] sm:$0xf]
    %v1475 = vld [vmem:[%s1473 + $0x4] sm:$0xf]
    %v1476 = vld [vmem:[%s1473 + $0x8] sm:$0xf]
    %v1477 = vld [vmem:[%s1473 + $0xc] sm:$0xf]
    %v1478 = vld [vmem:[%s1473 + $0x10] sm:$0xf]
    %v1479 = vld [vmem:[%s1473 + $0x14] sm:$0xf]
    %v1480 = vld [vmem:[%s1473 + $0x18] sm:$0xf]
    %v1481 = vld [vmem:[%s1473 + $0x1c] sm:$0xf]
    %v1482 = vld [vmem:[%s1473 + $0x20] sm:$0xf]
    %v1483 = vld [vmem:[%s1473 + $0x24] sm:$0xf]
    %v1484 = vld [vmem:[%s1473 + $0x28] sm:$0xf]
    %v1485 = vld [vmem:[%s1473 + $0x2c] sm:$0xf]
    %v1486 = vld [vmem:[%s1473 + $0x30] sm:$0xf]
    %v1487 = vld [vmem:[%s1473 + $0x34] sm:$0xf]
    %v1488 = vld [vmem:[%s1473 + $0x38] sm:$0xf]
    %v1489 = vld [vmem:[%s1473 + $0x3c] sm:$0xf]
    %v1506 = vunpack.c.l.b16 %v1474
    %v1507 = vunpack.c.l.b16 %v1475
    %v1508 = vunpack.c.l.b16 %v1476
    %v1509 = vunpack.c.l.b16 %v1477
    %v1510 = vunpack.c.l.b16 %v1478
    %v1511 = vunpack.c.l.b16 %v1479
    %v1512 = vunpack.c.l.b16 %v1480
    %v1513 = vunpack.c.l.b16 %v1481
    %v1514 = vunpack.c.l.b16 %v1482
    %v1515 = vunpack.c.l.b16 %v1483
    %v1516 = vunpack.c.l.b16 %v1484
    %v1517 = vunpack.c.l.b16 %v1485
    %v1518 = vunpack.c.l.b16 %v1486
    %v1519 = vunpack.c.l.b16 %v1487
    %v1520 = vunpack.c.l.b16 %v1488
    %v1521 = vunpack.c.l.b16 %v1489
    %v1522 = vpack.c.b16 %v1507, %v1506
    %v1523 = vpack.c.b16 %v1509, %v1508
    %v1524 = vpack.c.b16 %v1511, %v1510
    %v1525 = vpack.c.b16 %v1513, %v1512
    %v1526 = vpack.c.b16 %v1515, %v1514
    %v1527 = vpack.c.b16 %v1517, %v1516
    %v1528 = vpack.c.b16 %v1519, %v1518
    %v1529 = vpack.c.b16 %v1521, %v1520
    %1538 = vmatpush.bf16.msra.mxu0 %v1529
    %1539 = vmatpush.bf16.msra.mxu0 %v1528
    %1540 = vmatpush.bf16.msra.mxu0 %v1527
    %1541 = vmatpush.bf16.msra.mxu0 %v1526
    %1542 = vmatpush.bf16.msra.mxu0 %v1525
    %1543 = vmatpush.bf16.msra.mxu0 %v1524
    %1544 = vmatpush.bf16.msra.mxu0 %v1523
    %1545 = vmatpush.bf16.msra.mxu0 %v1522
    %1546 = vmatmul.bf16.gmra.mxu0 %v975
    %v1547 = vpop.f32.mrf.mxu0
    %v1548 = vadd.f32 0.0, %v1547
    %v1549 = vpop.f32.mrf.mxu0
    %v1550 = vadd.f32 0.0, %v1549
    %1551 = vmatmul.bf16.gmra.mxu0 %v976
    %v1552 = vpop.f32.mrf.mxu0
    %v1553 = vadd.f32 0.0, %v1552
    %v1554 = vpop.f32.mrf.mxu0
    %v1555 = vadd.f32 0.0, %v1554
    %1556 = vdwg.mxu0
    %v1557 = vadd.f32 %v1464, %v1548
    %v1558 = vadd.f32 %v1466, %v1550
    %v1559 = vadd.f32 %v1469, %v1553
    %v1560 = vadd.f32 %v1471, %v1555
    %s1561 = scalar_lea.vmem %s15, 1
    %v1562 = vld [vmem:[%s1561] sm:$0x1]
    %v1564 = vperm.slane %v1562, 0
    %v1566 = vadd.f32 %v1557, %v1564
    %v1567 = vadd.f32 %v1558, %v1564
    %v1568 = vadd.f32 %v1559, %v1564
    %v1569 = vadd.f32 %v1560, %v1564
    %v1570 = vmax.f32 %v1303, 0.0
    %v1571 = vmax.f32 %v1304, 0.0
    %v1572 = vmax.f32 %v1566, 0.0
    %v1573 = vmax.f32 %v1567, 0.0
    %v1574 = vmax.f32 %v1568, 0.0
    %v1575 = vmax.f32 %v1569, 0.0
    %v1576 = vpack.c.bf16 %v1571, %v1570
    %v1577 = vpack.c.bf16 %v1573, %v1572
    %v1578 = vpack.c.bf16 %v1575, %v1574
    %1579 = vmatpush.bf16.msra.mxu0 0
    %1580 = vmatpush.bf16.msra.mxu0 0
    %1581 = vmatpush.bf16.msra.mxu0 0
    %1582 = vmatpush.bf16.msra.mxu0 0
    %1583 = vmatpush.bf16.msra.mxu0 0
    %1584 = vmatpush.bf16.msra.mxu0 0
    %1585 = vmatpush.bf16.msra.mxu0 0
    %1586 = vmatpush.bf16.msra.mxu0 %v1576
    %1587 = vmatmul.bf16.gmra.mxu0 %v366
    %v1588 = vpop.f32.mrf.mxu0
    %v1589 = vadd.f32 0.0, %v1588
    %v1590 = vpop.f32.mrf.mxu0
    %v1591 = vadd.f32 0.0, %v1590
    %1592 = vmatmul.bf16.gmra.mxu0 %v369
    %v1593 = vpop.f32.mrf.mxu0
    %v1594 = vadd.f32 0.0, %v1593
    %v1595 = vpop.f32.mrf.mxu0
    %v1596 = vadd.f32 0.0, %v1595
    %1597 = vdwg.mxu0
    %v1598 = vpack.c.bf16 %v1591, %v1589
    %v1599 = vpack.c.bf16 %v1596, %v1594
    %s1600 = scalar_lea.vmem [#allocation8], 128
    %v1601 = vld [vmem:[%s1600] sm:$0xf]
    %v1602 = vld [vmem:[%s1600 + $0x4] sm:$0xf]
    %v1603 = vld [vmem:[%s1600 + $0x8] sm:$0xf]
    %v1604 = vld [vmem:[%s1600 + $0xc] sm:$0xf]
    %v1605 = vld [vmem:[%s1600 + $0x10] sm:$0xf]
    %v1606 = vld [vmem:[%s1600 + $0x14] sm:$0xf]
    %v1607 = vld [vmem:[%s1600 + $0x18] sm:$0xf]
    %v1608 = vld [vmem:[%s1600 + $0x1c] sm:$0xf]
    %v1609 = vld [vmem:[%s1600 + $0x20] sm:$0xf]
    %v1610 = vld [vmem:[%s1600 + $0x24] sm:$0xf]
    %v1611 = vld [vmem:[%s1600 + $0x28] sm:$0xf]
    %v1612 = vld [vmem:[%s1600 + $0x2c] sm:$0xf]
    %v1613 = vld [vmem:[%s1600 + $0x30] sm:$0xf]
    %v1614 = vld [vmem:[%s1600 + $0x34] sm:$0xf]
    %v1615 = vld [vmem:[%s1600 + $0x38] sm:$0xf]
    %v1616 = vld [vmem:[%s1600 + $0x3c] sm:$0xf]
    %s1617 = scalar_lea.vmem [#allocation10], 128
    %v1618 = vld [vmem:[%s1617] sm:$0xf]
    %v1619 = vld [vmem:[%s1617 + $0x4] sm:$0xf]
    %v1620 = vld [vmem:[%s1617 + $0x8] sm:$0xf]
    %v1621 = vld [vmem:[%s1617 + $0xc] sm:$0xf]
    %v1622 = vld [vmem:[%s1617 + $0x10] sm:$0xf]
    %v1623 = vld [vmem:[%s1617 + $0x14] sm:$0xf]
    %v1624 = vld [vmem:[%s1617 + $0x18] sm:$0xf]
    %v1625 = vld [vmem:[%s1617 + $0x1c] sm:$0xf]
    %v1626 = vld [vmem:[%s1617 + $0x20] sm:$0xf]
    %v1627 = vld [vmem:[%s1617 + $0x24] sm:$0xf]
    %v1628 = vld [vmem:[%s1617 + $0x28] sm:$0xf]
    %v1629 = vld [vmem:[%s1617 + $0x2c] sm:$0xf]
    %v1630 = vld [vmem:[%s1617 + $0x30] sm:$0xf]
    %v1631 = vld [vmem:[%s1617 + $0x34] sm:$0xf]
    %v1632 = vld [vmem:[%s1617 + $0x38] sm:$0xf]
    %v1633 = vld [vmem:[%s1617 + $0x3c] sm:$0xf]
    %v1650 = vunpack.c.l.b16 %v1618
    %v1651 = vunpack.c.l.b16 %v1619
    %v1652 = vunpack.c.l.b16 %v1620
    %v1653 = vunpack.c.l.b16 %v1621
    %v1654 = vunpack.c.l.b16 %v1622
    %v1655 = vunpack.c.l.b16 %v1623
    %v1656 = vunpack.c.l.b16 %v1624
    %v1657 = vunpack.c.l.b16 %v1625
    %v1658 = vunpack.c.l.b16 %v1626
    %v1659 = vunpack.c.l.b16 %v1627
    %v1660 = vunpack.c.l.b16 %v1628
    %v1661 = vunpack.c.l.b16 %v1629
    %v1662 = vunpack.c.l.b16 %v1630
    %v1663 = vunpack.c.l.b16 %v1631
    %v1664 = vunpack.c.l.b16 %v1632
    %v1665 = vunpack.c.l.b16 %v1633
    %v1666 = vpack.c.b16 %v1651, %v1650
    %v1667 = vpack.c.b16 %v1653, %v1652
    %v1668 = vpack.c.b16 %v1655, %v1654
    %v1669 = vpack.c.b16 %v1657, %v1656
    %v1670 = vpack.c.b16 %v1659, %v1658
    %v1671 = vpack.c.b16 %v1661, %v1660
    %v1672 = vpack.c.b16 %v1663, %v1662
    %v1673 = vpack.c.b16 %v1665, %v1664
    %1682 = vmatpush.bf16.msra.mxu0 %v1673
    %1683 = vmatpush.bf16.msra.mxu0 %v1672
    %1684 = vmatpush.bf16.msra.mxu0 %v1671
    %1685 = vmatpush.bf16.msra.mxu0 %v1670
    %1686 = vmatpush.bf16.msra.mxu0 %v1669
    %1687 = vmatpush.bf16.msra.mxu0 %v1668
    %1688 = vmatpush.bf16.msra.mxu0 %v1667
    %1689 = vmatpush.bf16.msra.mxu0 %v1666
    %1690 = vmatmul.bf16.gmra.mxu0 %v1577
    %v1691 = vpop.f32.mrf.mxu0
    %v1692 = vadd.f32 0.0, %v1691
    %v1693 = vpop.f32.mrf.mxu0
    %v1694 = vadd.f32 0.0, %v1693
    %1695 = vmatmul.bf16.gmra.mxu0 %v1578
    %v1696 = vpop.f32.mrf.mxu0
    %v1697 = vadd.f32 0.0, %v1696
    %v1698 = vpop.f32.mrf.mxu0
    %v1699 = vadd.f32 0.0, %v1698
    %1700 = vdwg.mxu0
    %v1717 = vunpack.c.l.b16 %v1601
    %v1718 = vunpack.c.l.b16 %v1602
    %v1719 = vunpack.c.l.b16 %v1603
    %v1720 = vunpack.c.l.b16 %v1604
    %v1721 = vunpack.c.l.b16 %v1605
    %v1722 = vunpack.c.l.b16 %v1606
    %v1723 = vunpack.c.l.b16 %v1607
    %v1724 = vunpack.c.l.b16 %v1608
    %v1725 = vunpack.c.l.b16 %v1609
    %v1726 = vunpack.c.l.b16 %v1610
    %v1727 = vunpack.c.l.b16 %v1611
    %v1728 = vunpack.c.l.b16 %v1612
    %v1729 = vunpack.c.l.b16 %v1613
    %v1730 = vunpack.c.l.b16 %v1614
    %v1731 = vunpack.c.l.b16 %v1615
    %v1732 = vunpack.c.l.b16 %v1616
    %v1733 = vpack.c.b16 %v1718, %v1717
    %v1734 = vpack.c.b16 %v1720, %v1719
    %v1735 = vpack.c.b16 %v1722, %v1721
    %v1736 = vpack.c.b16 %v1724, %v1723
    %v1737 = vpack.c.b16 %v1726, %v1725
    %v1738 = vpack.c.b16 %v1728, %v1727
    %v1739 = vpack.c.b16 %v1730, %v1729
    %v1740 = vpack.c.b16 %v1732, %v1731
    %1749 = vmatpush.bf16.msra.mxu0 %v1740
    %1750 = vmatpush.bf16.msra.mxu0 %v1739
    %1751 = vmatpush.bf16.msra.mxu0 %v1738
    %1752 = vmatpush.bf16.msra.mxu0 %v1737
    %1753 = vmatpush.bf16.msra.mxu0 %v1736
    %1754 = vmatpush.bf16.msra.mxu0 %v1735
    %1755 = vmatpush.bf16.msra.mxu0 %v1734
    %1756 = vmatpush.bf16.msra.mxu0 %v1733
    %1757 = vmatmul.bf16.gmra.mxu0 %v1598
    %v1758 = vpop.f32.mrf.mxu0
    %v1759 = vadd.f32 %v1692, %v1758
    %v1760 = vpop.f32.mrf.mxu0
    %v1761 = vadd.f32 %v1694, %v1760
    %1762 = vmatmul.bf16.gmra.mxu0 %v1599
    %v1763 = vpop.f32.mrf.mxu0
    %v1764 = vadd.f32 %v1697, %v1763
    %v1765 = vpop.f32.mrf.mxu0
    %v1766 = vadd.f32 %v1699, %v1765
    %1767 = vdwg.mxu0
    %s1768 = scalar_lea.vmem %s9, 2
    %v1769 = vld [vmem:[%s1768] sm:$0x1]
    %v1771 = vperm.slane %v1769, 0
    %v1773 = vadd.f32 %v1759, %v1771
    %v1774 = vadd.f32 %v1761, %v1771
    %v1775 = vadd.f32 %v1764, %v1771
    %v1776 = vadd.f32 %v1766, %v1771
    %1777 = vmatpush.msra.mxu0 0.0
    %1778 = vmatpush.msra.mxu0 0.0
    %1779 = vmatpush.msra.mxu0 0.0
    %1780 = vmatpush.msra.mxu0 0.0
    %1781 = vmatpush.msra.mxu0 0.0
    %1782 = vmatpush.msra.mxu0 0.0
    %1783 = vmatpush.msra.mxu0 0.0
    %1784 = vmatpush.msra.mxu0 0.0
    %1785 = vmatpush.msra.mxu0 0.0
    %1786 = vmatpush.msra.mxu0 0.0
    %1787 = vmatpush.msra.mxu0 0.0
    %1788 = vmatpush.msra.mxu0 0.0
    %1789 = vmatpush.msra.mxu0 %v1776
    %1790 = vmatpush.msra.mxu0 %v1775
    %1791 = vmatpush.msra.mxu0 %v1774
    %1792 = vmatpush.msra.mxu0 %v1773
    %1793 = vmatmul.f32.gmra.mxu0 %v595
    %v1794 = vpop.f32.mrf.mxu0
    %v1795 = vadd.f32 0.0, %v1794
    %1796 = vmatmul.f32.gmra.mxu0 %v598
    %v1797 = vpop.f32.mrf.mxu0
    %v1798 = vadd.f32 0.0, %v1797
    %1799 = vdwg.mxu0
    %s1800 = scalar_lea.vmem [#allocation11], 128
    %v1801 = vld [vmem:[%s1800] sm:$0xf]
    %v1802 = vld [vmem:[%s1800 + $0x4] sm:$0xf]
    %v1803 = vld [vmem:[%s1800 + $0x8] sm:$0xf]
    %v1804 = vld [vmem:[%s1800 + $0xc] sm:$0xf]
    %v1805 = vld [vmem:[%s1800 + $0x10] sm:$0xf]
    %v1806 = vld [vmem:[%s1800 + $0x14] sm:$0xf]
    %v1807 = vld [vmem:[%s1800 + $0x18] sm:$0xf]
    %v1808 = vld [vmem:[%s1800 + $0x1c] sm:$0xf]
    %v1809 = vld [vmem:[%s1800 + $0x20] sm:$0xf]
    %v1810 = vld [vmem:[%s1800 + $0x24] sm:$0xf]
    %v1811 = vld [vmem:[%s1800 + $0x28] sm:$0xf]
    %v1812 = vld [vmem:[%s1800 + $0x2c] sm:$0xf]
    %v1813 = vld [vmem:[%s1800 + $0x30] sm:$0xf]
    %v1814 = vld [vmem:[%s1800 + $0x34] sm:$0xf]
    %v1815 = vld [vmem:[%s1800 + $0x38] sm:$0xf]
    %v1816 = vld [vmem:[%s1800 + $0x3c] sm:$0xf]
    %s1817 = scalar_lea.vmem %s11, 2
    %v1818 = vld [vmem:[%s1817] sm:$0x1]
    %v1820 = vperm.slane %v1818, 0
    %v1838 = vunpack.c.l.b16 %v1801
    %v1839 = vunpack.c.l.b16 %v1802
    %v1840 = vunpack.c.l.b16 %v1803
    %v1841 = vunpack.c.l.b16 %v1804
    %v1842 = vunpack.c.l.b16 %v1805
    %v1843 = vunpack.c.l.b16 %v1806
    %v1844 = vunpack.c.l.b16 %v1807
    %v1845 = vunpack.c.l.b16 %v1808
    %v1846 = vunpack.c.l.b16 %v1809
    %v1847 = vunpack.c.l.b16 %v1810
    %v1848 = vunpack.c.l.b16 %v1811
    %v1849 = vunpack.c.l.b16 %v1812
    %v1850 = vunpack.c.l.b16 %v1813
    %v1851 = vunpack.c.l.b16 %v1814
    %v1852 = vunpack.c.l.b16 %v1815
    %v1853 = vunpack.c.l.b16 %v1816
    %v1854 = vpack.c.b16 %v1839, %v1838
    %v1855 = vpack.c.b16 %v1841, %v1840
    %v1856 = vpack.c.b16 %v1843, %v1842
    %v1857 = vpack.c.b16 %v1845, %v1844
    %v1858 = vpack.c.b16 %v1847, %v1846
    %v1859 = vpack.c.b16 %v1849, %v1848
    %v1860 = vpack.c.b16 %v1851, %v1850
    %v1861 = vpack.c.b16 %v1853, %v1852
    %1870 = vmatpush.bf16.msra.mxu0 %v1861
    %1871 = vmatpush.bf16.msra.mxu0 %v1860
    %1872 = vmatpush.bf16.msra.mxu0 %v1859
    %1873 = vmatpush.bf16.msra.mxu0 %v1858
    %1874 = vmatpush.bf16.msra.mxu0 %v1857
    %1875 = vmatpush.bf16.msra.mxu0 %v1856
    %1876 = vmatpush.bf16.msra.mxu0 %v1855
    %1877 = vmatpush.bf16.msra.mxu0 %v1854
    %1878 = vmatmul.bf16.gmra.mxu0 %v1576
    %v1879 = vpop.f32.mrf.mxu0
    %v1880 = vadd.f32 %v1820, %v1879
    %v1881 = vpop.f32.mrf.mxu0
    %v1882 = vadd.f32 %v1820, %v1881
    %1883 = vdwg.mxu0
    %v1884 = vadd.f32 %v1880, %v1795
    %v1885 = vadd.f32 %v1882, %v1798
    %1886 = vst [vmem:[#allocation17] sm:$0xff] %v1884
    %1887 = vst [vmem:[#allocation17 + $0x8] sm:$0xff] %v1885
    // Predicated region
    $region102: #{tpu_custom_call.1} parent=1 // pred_check
      _
    $region103: #{tpu_custom_call.1} parent=1 // pred_check_branch
      %1889 = sbr.rel (0) target = $region105
    $region104: #{tpu_custom_call.1} parent=1 // pred_region
      %1891 = vsyncadd [#allocation4], 0
      %s1892 = sshll.u32 [#allocation17], 4
      %s1893 = int_to_ptr.vmem [resolvable:$true] %s1892
      %s1894 = sshll.u32 %s16, 4
      %s1895 = int_to_ptr.hbm [resolvable:$true] %s1894
      %1900 = dma.vmem_to_hbm [thread:$0]  %s1893, 256, %s1895, [#allocation4], 128, 128, 8
    $region105: #{tpu_custom_call.1} parent=1 // pred_fallthru
      _
    // Predicated region
    $region106: #{tpu_custom_call.1} parent=1 // pred_check
      _
    $region107: #{tpu_custom_call.1} parent=1 // pred_check_branch
      %1902 = sbr.rel (0) target = $region109
    $region108: #{tpu_custom_call.1} parent=1 // pred_region
      %1904 = dma.done [#allocation4], 256
    $region109: #{tpu_custom_call.1} parent=1 // pred_fallthru
      _
    %1905 = vsyncpa [#allocation3], 1
    %1906 = vsyncpa [#allocation6], 1
    %1907 = vsyncpa [#allocation9], 1
    %1908 = vsyncpa [#allocation12], 1
    %1909 = vsyncpa [#allocation15], 1
    %1910 = vsyncpa [#allocation4], 1

</llo_original>
